<compile_context>
chip_gen: v5e
topology: v5e:2x2
jax: 0.10.0
libtpu: 0.0.40
codegen_flags: <defaults>
</compile_context>

<pallas_src>
import jax
import jax.numpy as jnp
import numpy as np
from jax import lax
from jax.experimental import pallas as pl
from jax.experimental.pallas import tpu as pltpu

C_OUT, KH, KW = 10, 5, 5
H_IN = W_IN = 32
H_CONV = W_CONV = H_IN - KH + 1            # 28
H_MAX = W_MAX = H_CONV - 2                 # 26  (stride-1 3x3 max map)
H_POOL = W_POOL = (H_CONV - 3) // 2 + 1    # 13
NUM_CLASSES = 10
FLAT = C_OUT * H_POOL * W_POOL             # 1690 (matches nn.Linear(1690, 10))
SLAB_W = C_OUT * W_CONV                    # 280: 10 channel blocks of 28 lanes
RED_W = SLAB_W - 2                         # 278: lane width after 3-wide column max


def fused_cnn_kernel(x_ref, band_ref, cbias_ref, wbig_ref, bfrow_ref, out_ref):
    # x_ref   : VMEM (TB, 32, 32) f32       TB input images
    # band_ref: VMEM (5, 32, 280) bf16      banded conv weights (one slab per tap row)
    # cbias_ref: VMEM (1, 280) f32          conv bias, repeated per channel block
    # wbig_ref: VMEM (10, 26, 278) f32      FC weights, pool stride-2 folded in as zeros
    # bfrow_ref: VMEM (1, 10) f32           fc bias
    # out_ref : VMEM (TB, 10) f32           logits
    tb = x_ref.shape[0]
    cbias = cbias_ref[...]                                    # (1, 280)
    bf_row = bfrow_ref[...]                                   # (1, 10)
    lane = lax.broadcasted_iota(jnp.int32, (1, NUM_CLASSES), 1)
    sub = lax.broadcasted_iota(jnp.int32, (tb, 1), 0)

    def img_body(i, logits):
        x = x_ref[i]                                          # (32, 32) f32
        # ---- 5x5 valid conv on the MXU: 5 banded bf16 matmuls, f32 accumulation ----
        # acc[h, o*28 + w] = conv[o, h, w]
        acc = None
        for di in range(KH):
            xs = x[di:di + H_CONV, :].astype(jnp.bfloat16)    # (28, 32)
            t = jnp.dot(xs, band_ref[di], preferred_element_type=jnp.float32)
            acc = t if acc is None else acc + t               # (28, 280) f32
        act = jnp.maximum(acc + cbias, 0.0)                   # conv bias + ReLU

        # ---- 3x3 stride-1 max map for all 10 channels at once ----
        # Lanes 26,27 / rows 26,27 of each channel block mix neighbours; they are
        # masked out by zeros in wbig, so no masking is needed here.
        m1 = jnp.maximum(jnp.maximum(act[:, 0:RED_W], act[:, 1:RED_W + 1]),
                         act[:, 2:RED_W + 2])                 # (28, 278)
        m2 = jnp.maximum(jnp.maximum(m1[0:H_MAX, :], m1[1:H_MAX + 1, :]),
                         m1[2:H_MAX + 2, :])                  # (26, 278)

        # ---- FC: stride-2 subsample lives in wbig's zeros; one reduce per class ----
        row = jnp.zeros((1, NUM_CLASSES), jnp.float32)
        for c in range(NUM_CLASSES):
            s = jnp.sum(m2 * wbig_ref[c])
            row = jnp.where(lane == c, s, row)
        row = row + bf_row
        return jnp.where(sub == i, row, logits)

    out_ref[...] = lax.fori_loop(0, tb, img_body,
                                 jnp.zeros((tb, NUM_CLASSES), jnp.float32))


def prepare_params(wc, bc, wf, bf):
    """Input-independent parameter folding; call once, reuse for every forward."""
    # Banded conv weights: band[di, j, o*28+w] = wc[o, 0, di, j-w] for 0 <= j-w < 5.
    shift = np.zeros((KW, H_IN, W_CONV), np.float32)
    for dj in range(KW):
        shift[dj, np.arange(W_CONV) + dj, np.arange(W_CONV)] = 1.0
    band = jnp.einsum("odk,kjw->djow", wc[:, 0].astype(jnp.float32),
                      jnp.asarray(shift))
    band = band.reshape(KH, H_IN, SLAB_W).astype(jnp.bfloat16)

    # Conv bias row, repeated over each channel's 28-lane block.
    cbias = jnp.repeat(bc.astype(jnp.float32), W_CONV)[None, :]          # (1, 280)

    # FC weight with the stride-2 pooling subsample folded in:
    # wbig[c, 2i, o*28 + 2j] = wf[c, o*169 + i*13 + j], zeros elsewhere.
    wf4 = wf.reshape(NUM_CLASSES, C_OUT, H_POOL, W_POOL).astype(jnp.float32)
    wbig = jnp.zeros((NUM_CLASSES, H_MAX, RED_W), jnp.float32)
    for o in range(C_OUT):
        wbig = wbig.at[:, 0:2 * H_POOL:2,
                       o * W_CONV:o * W_CONV + 2 * W_POOL:2].set(wf4[:, o])

    bf_row = bf.reshape(1, NUM_CLASSES).astype(jnp.float32)
    return band, cbias, wbig, bf_row


def simple_cnn_forward(x, band, cbias, wbig, bf_row, *, tb=None):
    B = x.shape[0]
    if tb is None:  # prefer 8 (sublane-aligned output block, good overhead amortization)
        tb = 8 if B % 8 == 0 else (4 if B % 4 == 0 else (2 if B % 2 == 0 else 1))
    assert B % tb == 0
    x3 = x.reshape(B, H_IN, W_IN).astype(jnp.float32)

    return pl.pallas_call(
        fused_cnn_kernel,
        out_shape=jax.ShapeDtypeStruct((B, NUM_CLASSES), jnp.float32),
        grid=(B // tb,),
        in_specs=[
            pl.BlockSpec((tb, H_IN, W_IN), lambda b: (b, 0, 0)),          # images
            pl.BlockSpec((KH, H_IN, SLAB_W), lambda b: (0, 0, 0)),        # conv bands
            pl.BlockSpec((1, SLAB_W), lambda b: (0, 0)),                  # conv bias row
            pl.BlockSpec((NUM_CLASSES, H_MAX, RED_W), lambda b: (0, 0, 0)),  # folded FC w
            pl.BlockSpec((1, NUM_CLASSES), lambda b: (0, 0)),             # fc bias row
        ],
        out_specs=pl.BlockSpec((tb, NUM_CLASSES), lambda b: (b, 0)),
        compiler_params=pltpu.CompilerParams(dimension_semantics=("parallel",)),
    )(x3, band, cbias, wbig, bf_row)


def reference_forward(x, wc, bc, wf, bf):
    y = lax.conv_general_dilated(x, wc, window_strides=(1, 1), padding="VALID",
                                 dimension_numbers=("NCHW", "OIHW", "NCHW"))
    y = y + bc.reshape(1, C_OUT, 1, 1)
    y = jnp.maximum(y, 0.0)
    y = lax.reduce_window(y, -jnp.inf, lax.max,
                          window_dimensions=(1, 1, 3, 3),
                          window_strides=(1, 1, 2, 2), padding="VALID")
    y = y.reshape(x.shape[0], -1)
    return y @ wf.T + bf


if __name__ == "__main__":
    key = jax.random.PRNGKey(0)
    k1, k2, k3, k4, k5 = jax.random.split(key, 5)
    # Deterministic synthetic parameters (shapes from SimpleCNN.__init__).
    wc = jax.random.normal(k1, (C_OUT, 1, KH, KW), jnp.float32) * 0.2
    bc = jax.random.normal(k2, (C_OUT,), jnp.float32) * 0.1
    wf = jax.random.normal(k3, (NUM_CLASSES, FLAT), jnp.float32) * 0.02
    bf = jax.random.normal(k4, (NUM_CLASSES,), jnp.float32) * 0.1
    # fc expects 1690 = 10*13*13 features -> 32x32 single-channel input.
    # B=16 with TB=8 gives a grid of 2 (even, so v7x can use both TensorCores).
    x = jax.random.normal(k5, (16, 1, H_IN, W_IN), jnp.float32)

    params = prepare_params(wc, bc, wf, bf)        # hoisted out of the per-call path
    fwd = jax.jit(simple_cnn_forward)

    out = jax.block_until_ready(fwd(x, *params))
    ref = jax.block_until_ready(reference_forward(x, wc, bc, wf, bf))
    assert out.shape == (16, NUM_CLASSES)
    # Loose tolerance because the conv runs on the MXU with bf16 inputs (f32 accumulate).
    np.testing.assert_allclose(np.asarray(out), np.asarray(ref), rtol=2e-2, atol=2e-2)
    print("KERNEL_OK")
</pallas_src>

<mosaic_0001>
module attributes {stable_mosaic.version = 11 : i64} {
  func.func @fused_cnn_kernel(%arg0: i32, %arg1: memref<8x32x32xf32, #tpu.memory_space<vmem>>, %arg2: memref<5x32x280xbf16, #tpu.memory_space<vmem>>, %arg3: memref<1x280xf32, #tpu.memory_space<vmem>>, %arg4: memref<10x26x278xf32, #tpu.memory_space<vmem>>, %arg5: memref<1x10xf32, #tpu.memory_space<vmem>>, %arg6: memref<8x10xf32, #tpu.memory_space<vmem>>) attributes {dimension_semantics = [#tpu.dimension_semantics<parallel>], iteration_bounds = array<i64: 2>, scalar_prefetch = 0 : i64, scratch_operands = 0 : i64, tpu.core_type = #tpu.core_type<tc>, window_params = [{transform_indices = @transform_0, window_bounds = array<i64: 8, 32, 32>}, {pipeline_mode = #tpu.pipeline_mode<synchronous>, transform_indices = @transform_1, window_bounds = array<i64: 5, 32, 280>}, {pipeline_mode = #tpu.pipeline_mode<synchronous>, transform_indices = @transform_2, window_bounds = array<i64: 1, 280>}, {pipeline_mode = #tpu.pipeline_mode<synchronous>, transform_indices = @transform_3, window_bounds = array<i64: 10, 26, 278>}, {pipeline_mode = #tpu.pipeline_mode<synchronous>, transform_indices = @transform_4, window_bounds = array<i64: 1, 10>}, {transform_indices = @transform_5, window_bounds = array<i64: 8, 10>}]} {
    %c0 = arith.constant 0 : index
    %c0_0 = arith.constant 0 : index
    %0 = vector.load %arg3[%c0, %c0_0] : memref<1x280xf32, #tpu.memory_space<vmem>>, vector<1x280xf32>
    %c0_1 = arith.constant 0 : index
    %c0_2 = arith.constant 0 : index
    %1 = vector.load %arg5[%c0_1, %c0_2] : memref<1x10xf32, #tpu.memory_space<vmem>>, vector<1x10xf32>
    %2 = tpu.iota {dimensions = array<i32: 1>} : vector<1x10xi32>
    %3 = tpu.iota {dimensions = array<i32: 0>} : vector<8x1xi32>
    %cst = arith.constant 0.000000e+00 : f32
    %4 = vector.broadcast %cst : f32 to vector<8x10xf32>
    %c0_i32 = arith.constant 0 : i32
    %c8_i32 = arith.constant 8 : i32
    %5 = arith.addi %c0_i32, %c8_i32 : i32
    %c1_i32 = arith.constant 1 : i32
    %6 = scf.for %arg7 = %c0_i32 to %5 step %c1_i32 iter_args(%arg8 = %4) -> (vector<8x10xf32>)  : i32 {
      %8 = arith.index_cast %arg7 : i32 to index
      %c0_6 = arith.constant 0 : index
      %c0_7 = arith.constant 0 : index
      %9 = vector.load %arg1[%8, %c0_6, %c0_7] : memref<8x32x32xf32, #tpu.memory_space<vmem>>, vector<1x32x32xf32>
      %10 = vector.shape_cast %9 : vector<1x32x32xf32> to vector<32x32xf32>
      %11 = vector.extract_strided_slice %10 {offsets = [0, 0], sizes = [28, 32], strides = [1, 1]} : vector<32x32xf32> to vector<28x32xf32>
      %12 = arith.truncf %11 : vector<28x32xf32> to vector<28x32xbf16>
      %c0_8 = arith.constant 0 : index
      %c0_9 = arith.constant 0 : index
      %c0_10 = arith.constant 0 : index
      %13 = vector.load %arg2[%c0_8, %c0_9, %c0_10] : memref<5x32x280xbf16, #tpu.memory_space<vmem>>, vector<1x32x280xbf16>
      %14 = vector.shape_cast %13 : vector<1x32x280xbf16> to vector<32x280xbf16>
      %cst_11 = arith.constant dense<0.000000e+00> : vector<28x280xf32>
      %15 = tpu.matmul %12, %14, %cst_11 {dimension_numbers = #tpu.dot_dimension_numbers<[1], [0], [0], [1], [0, 0, 1, 1], [], []>} : vector<28x32xbf16>, vector<32x280xbf16>, vector<28x280xf32> -> vector<28x280xf32>
      %16 = vector.extract_strided_slice %10 {offsets = [1, 0], sizes = [28, 32], strides = [1, 1]} : vector<32x32xf32> to vector<28x32xf32>
      %17 = arith.truncf %16 : vector<28x32xf32> to vector<28x32xbf16>
      %c1 = arith.constant 1 : index
      %c0_12 = arith.constant 0 : index
      %c0_13 = arith.constant 0 : index
      %18 = vector.load %arg2[%c1, %c0_12, %c0_13] : memref<5x32x280xbf16, #tpu.memory_space<vmem>>, vector<1x32x280xbf16>
      %19 = vector.shape_cast %18 : vector<1x32x280xbf16> to vector<32x280xbf16>
      %cst_14 = arith.constant dense<0.000000e+00> : vector<28x280xf32>
      %20 = tpu.matmul %17, %19, %cst_14 {dimension_numbers = #tpu.dot_dimension_numbers<[1], [0], [0], [1], [0, 0, 1, 1], [], []>} : vector<28x32xbf16>, vector<32x280xbf16>, vector<28x280xf32> -> vector<28x280xf32>
      %21 = arith.addf %15, %20 : vector<28x280xf32>
      %22 = vector.extract_strided_slice %10 {offsets = [2, 0], sizes = [28, 32], strides = [1, 1]} : vector<32x32xf32> to vector<28x32xf32>
      %23 = arith.truncf %22 : vector<28x32xf32> to vector<28x32xbf16>
      %c2 = arith.constant 2 : index
      %c0_15 = arith.constant 0 : index
      %c0_16 = arith.constant 0 : index
      %24 = vector.load %arg2[%c2, %c0_15, %c0_16] : memref<5x32x280xbf16, #tpu.memory_space<vmem>>, vector<1x32x280xbf16>
      %25 = vector.shape_cast %24 : vector<1x32x280xbf16> to vector<32x280xbf16>
      %cst_17 = arith.constant dense<0.000000e+00> : vector<28x280xf32>
      %26 = tpu.matmul %23, %25, %cst_17 {dimension_numbers = #tpu.dot_dimension_numbers<[1], [0], [0], [1], [0, 0, 1, 1], [], []>} : vector<28x32xbf16>, vector<32x280xbf16>, vector<28x280xf32> -> vector<28x280xf32>
      %27 = arith.addf %21, %26 : vector<28x280xf32>
      %28 = vector.extract_strided_slice %10 {offsets = [3, 0], sizes = [28, 32], strides = [1, 1]} : vector<32x32xf32> to vector<28x32xf32>
      %29 = arith.truncf %28 : vector<28x32xf32> to vector<28x32xbf16>
      %c3 = arith.constant 3 : index
      %c0_18 = arith.constant 0 : index
      %c0_19 = arith.constant 0 : index
      %30 = vector.load %arg2[%c3, %c0_18, %c0_19] : memref<5x32x280xbf16, #tpu.memory_space<vmem>>, vector<1x32x280xbf16>
      %31 = vector.shape_cast %30 : vector<1x32x280xbf16> to vector<32x280xbf16>
      %cst_20 = arith.constant dense<0.000000e+00> : vector<28x280xf32>
      %32 = tpu.matmul %29, %31, %cst_20 {dimension_numbers = #tpu.dot_dimension_numbers<[1], [0], [0], [1], [0, 0, 1, 1], [], []>} : vector<28x32xbf16>, vector<32x280xbf16>, vector<28x280xf32> -> vector<28x280xf32>
      %33 = arith.addf %27, %32 : vector<28x280xf32>
      %34 = vector.extract_strided_slice %10 {offsets = [4, 0], sizes = [28, 32], strides = [1, 1]} : vector<32x32xf32> to vector<28x32xf32>
      %35 = arith.truncf %34 : vector<28x32xf32> to vector<28x32xbf16>
      %c4 = arith.constant 4 : index
      %c0_21 = arith.constant 0 : index
      %c0_22 = arith.constant 0 : index
      %36 = vector.load %arg2[%c4, %c0_21, %c0_22] : memref<5x32x280xbf16, #tpu.memory_space<vmem>>, vector<1x32x280xbf16>
      %37 = vector.shape_cast %36 : vector<1x32x280xbf16> to vector<32x280xbf16>
      %cst_23 = arith.constant dense<0.000000e+00> : vector<28x280xf32>
      %38 = tpu.matmul %35, %37, %cst_23 {dimension_numbers = #tpu.dot_dimension_numbers<[1], [0], [0], [1], [0, 0, 1, 1], [], []>} : vector<28x32xbf16>, vector<32x280xbf16>, vector<28x280xf32> -> vector<28x280xf32>
      %39 = arith.addf %33, %38 : vector<28x280xf32>
      %40 = vector.broadcast %0 : vector<1x280xf32> to vector<28x280xf32>
      %41 = arith.addf %39, %40 : vector<28x280xf32>
      %cst_24 = arith.constant 0.000000e+00 : f32
      %42 = vector.broadcast %cst_24 : f32 to vector<28x280xf32>
      %43 = arith.maximumf %41, %42 : vector<28x280xf32>
      %44 = vector.extract_strided_slice %43 {offsets = [0, 0], sizes = [28, 278], strides = [1, 1]} : vector<28x280xf32> to vector<28x278xf32>
      %45 = vector.extract_strided_slice %43 {offsets = [0, 1], sizes = [28, 278], strides = [1, 1]} : vector<28x280xf32> to vector<28x278xf32>
      %46 = arith.maximumf %44, %45 : vector<28x278xf32>
      %47 = vector.extract_strided_slice %43 {offsets = [0, 2], sizes = [28, 278], strides = [1, 1]} : vector<28x280xf32> to vector<28x278xf32>
      %48 = arith.maximumf %46, %47 : vector<28x278xf32>
      %49 = vector.extract_strided_slice %48 {offsets = [0, 0], sizes = [26, 278], strides = [1, 1]} : vector<28x278xf32> to vector<26x278xf32>
      %50 = vector.extract_strided_slice %48 {offsets = [1, 0], sizes = [26, 278], strides = [1, 1]} : vector<28x278xf32> to vector<26x278xf32>
      %51 = arith.maximumf %49, %50 : vector<26x278xf32>
      %52 = vector.extract_strided_slice %48 {offsets = [2, 0], sizes = [26, 278], strides = [1, 1]} : vector<28x278xf32> to vector<26x278xf32>
      %53 = arith.maximumf %51, %52 : vector<26x278xf32>
      %cst_25 = arith.constant 0.000000e+00 : f32
      %54 = vector.broadcast %cst_25 : f32 to vector<1x10xf32>
      %c0_26 = arith.constant 0 : index
      %c0_27 = arith.constant 0 : index
      %c0_28 = arith.constant 0 : index
      %55 = vector.load %arg4[%c0_26, %c0_27, %c0_28] : memref<10x26x278xf32, #tpu.memory_space<vmem>>, vector<1x26x278xf32>
      %56 = vector.shape_cast %55 : vector<1x26x278xf32> to vector<26x278xf32>
      %57 = arith.mulf %53, %56 : vector<26x278xf32>
      %58 = vector.shape_cast %57 : vector<26x278xf32> to vector<1x26x278xf32>
      %cst_29 = arith.constant dense<0.000000e+00> : vector<1xf32>
      %59 = vector.multi_reduction <add>, %58, %cst_29 [1, 2] : vector<1x26x278xf32> to vector<1xf32>
      %60 = vector.shape_cast %59 : vector<1xf32> to vector<1x1x1xf32>
      %61 = vector.extract %60[0, 0, 0] : f32 from vector<1x1x1xf32>
      %c0_i32_30 = arith.constant 0 : i32
      %62 = vector.broadcast %c0_i32_30 : i32 to vector<1x10xi32>
      %63 = arith.cmpi eq, %2, %62 : vector<1x10xi32>
      %64 = vector.broadcast %61 : f32 to vector<1x10xf32>
      %65 = arith.select %63, %64, %54 : vector<1x10xi1>, vector<1x10xf32>
      %c1_31 = arith.constant 1 : index
      %c0_32 = arith.constant 0 : index
      %c0_33 = arith.constant 0 : index
      %66 = vector.load %arg4[%c1_31, %c0_32, %c0_33] : memref<10x26x278xf32, #tpu.memory_space<vmem>>, vector<1x26x278xf32>
      %67 = vector.shape_cast %66 : vector<1x26x278xf32> to vector<26x278xf32>
      %68 = arith.mulf %53, %67 : vector<26x278xf32>
      %69 = vector.shape_cast %68 : vector<26x278xf32> to vector<1x26x278xf32>
      %cst_34 = arith.constant dense<0.000000e+00> : vector<1xf32>
      %70 = vector.multi_reduction <add>, %69, %cst_34 [1, 2] : vector<1x26x278xf32> to vector<1xf32>
      %71 = vector.shape_cast %70 : vector<1xf32> to vector<1x1x1xf32>
      %72 = vector.extract %71[0, 0, 0] : f32 from vector<1x1x1xf32>
      %c1_i32_35 = arith.constant 1 : i32
      %73 = vector.broadcast %c1_i32_35 : i32 to vector<1x10xi32>
      %74 = arith.cmpi eq, %2, %73 : vector<1x10xi32>
      %75 = vector.broadcast %72 : f32 to vector<1x10xf32>
      %76 = arith.select %74, %75, %65 : vector<1x10xi1>, vector<1x10xf32>
      %c2_36 = arith.constant 2 : index
      %c0_37 = arith.constant 0 : index
      %c0_38 = arith.constant 0 : index
      %77 = vector.load %arg4[%c2_36, %c0_37, %c0_38] : memref<10x26x278xf32, #tpu.memory_space<vmem>>, vector<1x26x278xf32>
      %78 = vector.shape_cast %77 : vector<1x26x278xf32> to vector<26x278xf32>
      %79 = arith.mulf %53, %78 : vector<26x278xf32>
      %80 = vector.shape_cast %79 : vector<26x278xf32> to vector<1x26x278xf32>
      %cst_39 = arith.constant dense<0.000000e+00> : vector<1xf32>
      %81 = vector.multi_reduction <add>, %80, %cst_39 [1, 2] : vector<1x26x278xf32> to vector<1xf32>
      %82 = vector.shape_cast %81 : vector<1xf32> to vector<1x1x1xf32>
      %83 = vector.extract %82[0, 0, 0] : f32 from vector<1x1x1xf32>
      %c2_i32 = arith.constant 2 : i32
      %84 = vector.broadcast %c2_i32 : i32 to vector<1x10xi32>
      %85 = arith.cmpi eq, %2, %84 : vector<1x10xi32>
      %86 = vector.broadcast %83 : f32 to vector<1x10xf32>
      %87 = arith.select %85, %86, %76 : vector<1x10xi1>, vector<1x10xf32>
      %c3_40 = arith.constant 3 : index
      %c0_41 = arith.constant 0 : index
      %c0_42 = arith.constant 0 : index
      %88 = vector.load %arg4[%c3_40, %c0_41, %c0_42] : memref<10x26x278xf32, #tpu.memory_space<vmem>>, vector<1x26x278xf32>
      %89 = vector.shape_cast %88 : vector<1x26x278xf32> to vector<26x278xf32>
      %90 = arith.mulf %53, %89 : vector<26x278xf32>
      %91 = vector.shape_cast %90 : vector<26x278xf32> to vector<1x26x278xf32>
      %cst_43 = arith.constant dense<0.000000e+00> : vector<1xf32>
      %92 = vector.multi_reduction <add>, %91, %cst_43 [1, 2] : vector<1x26x278xf32> to vector<1xf32>
      %93 = vector.shape_cast %92 : vector<1xf32> to vector<1x1x1xf32>
      %94 = vector.extract %93[0, 0, 0] : f32 from vector<1x1x1xf32>
      %c3_i32 = arith.constant 3 : i32
      %95 = vector.broadcast %c3_i32 : i32 to vector<1x10xi32>
      %96 = arith.cmpi eq, %2, %95 : vector<1x10xi32>
      %97 = vector.broadcast %94 : f32 to vector<1x10xf32>
      %98 = arith.select %96, %97, %87 : vector<1x10xi1>, vector<1x10xf32>
      %c4_44 = arith.constant 4 : index
      %c0_45 = arith.constant 0 : index
      %c0_46 = arith.constant 0 : index
      %99 = vector.load %arg4[%c4_44, %c0_45, %c0_46] : memref<10x26x278xf32, #tpu.memory_space<vmem>>, vector<1x26x278xf32>
      %100 = vector.shape_cast %99 : vector<1x26x278xf32> to vector<26x278xf32>
      %101 = arith.mulf %53, %100 : vector<26x278xf32>
      %102 = vector.shape_cast %101 : vector<26x278xf32> to vector<1x26x278xf32>
      %cst_47 = arith.constant dense<0.000000e+00> : vector<1xf32>
      %103 = vector.multi_reduction <add>, %102, %cst_47 [1, 2] : vector<1x26x278xf32> to vector<1xf32>
      %104 = vector.shape_cast %103 : vector<1xf32> to vector<1x1x1xf32>
      %105 = vector.extract %104[0, 0, 0] : f32 from vector<1x1x1xf32>
      %c4_i32 = arith.constant 4 : i32
      %106 = vector.broadcast %c4_i32 : i32 to vector<1x10xi32>
      %107 = arith.cmpi eq, %2, %106 : vector<1x10xi32>
      %108 = vector.broadcast %105 : f32 to vector<1x10xf32>
      %109 = arith.select %107, %108, %98 : vector<1x10xi1>, vector<1x10xf32>
      %c5 = arith.constant 5 : index
      %c0_48 = arith.constant 0 : index
      %c0_49 = arith.constant 0 : index
      %110 = vector.load %arg4[%c5, %c0_48, %c0_49] : memref<10x26x278xf32, #tpu.memory_space<vmem>>, vector<1x26x278xf32>
      %111 = vector.shape_cast %110 : vector<1x26x278xf32> to vector<26x278xf32>
      %112 = arith.mulf %53, %111 : vector<26x278xf32>
      %113 = vector.shape_cast %112 : vector<26x278xf32> to vector<1x26x278xf32>
      %cst_50 = arith.constant dense<0.000000e+00> : vector<1xf32>
      %114 = vector.multi_reduction <add>, %113, %cst_50 [1, 2] : vector<1x26x278xf32> to vector<1xf32>
      %115 = vector.shape_cast %114 : vector<1xf32> to vector<1x1x1xf32>
      %116 = vector.extract %115[0, 0, 0] : f32 from vector<1x1x1xf32>
      %c5_i32 = arith.constant 5 : i32
      %117 = vector.broadcast %c5_i32 : i32 to vector<1x10xi32>
      %118 = arith.cmpi eq, %2, %117 : vector<1x10xi32>
      %119 = vector.broadcast %116 : f32 to vector<1x10xf32>
      %120 = arith.select %118, %119, %109 : vector<1x10xi1>, vector<1x10xf32>
      %c6 = arith.constant 6 : index
      %c0_51 = arith.constant 0 : index
      %c0_52 = arith.constant 0 : index
      %121 = vector.load %arg4[%c6, %c0_51, %c0_52] : memref<10x26x278xf32, #tpu.memory_space<vmem>>, vector<1x26x278xf32>
      %122 = vector.shape_cast %121 : vector<1x26x278xf32> to vector<26x278xf32>
      %123 = arith.mulf %53, %122 : vector<26x278xf32>
      %124 = vector.shape_cast %123 : vector<26x278xf32> to vector<1x26x278xf32>
      %cst_53 = arith.constant dense<0.000000e+00> : vector<1xf32>
      %125 = vector.multi_reduction <add>, %124, %cst_53 [1, 2] : vector<1x26x278xf32> to vector<1xf32>
      %126 = vector.shape_cast %125 : vector<1xf32> to vector<1x1x1xf32>
      %127 = vector.extract %126[0, 0, 0] : f32 from vector<1x1x1xf32>
      %c6_i32 = arith.constant 6 : i32
      %128 = vector.broadcast %c6_i32 : i32 to vector<1x10xi32>
      %129 = arith.cmpi eq, %2, %128 : vector<1x10xi32>
      %130 = vector.broadcast %127 : f32 to vector<1x10xf32>
      %131 = arith.select %129, %130, %120 : vector<1x10xi1>, vector<1x10xf32>
      %c7 = arith.constant 7 : index
      %c0_54 = arith.constant 0 : index
      %c0_55 = arith.constant 0 : index
      %132 = vector.load %arg4[%c7, %c0_54, %c0_55] : memref<10x26x278xf32, #tpu.memory_space<vmem>>, vector<1x26x278xf32>
      %133 = vector.shape_cast %132 : vector<1x26x278xf32> to vector<26x278xf32>
      %134 = arith.mulf %53, %133 : vector<26x278xf32>
      %135 = vector.shape_cast %134 : vector<26x278xf32> to vector<1x26x278xf32>
      %cst_56 = arith.constant dense<0.000000e+00> : vector<1xf32>
      %136 = vector.multi_reduction <add>, %135, %cst_56 [1, 2] : vector<1x26x278xf32> to vector<1xf32>
      %137 = vector.shape_cast %136 : vector<1xf32> to vector<1x1x1xf32>
      %138 = vector.extract %137[0, 0, 0] : f32 from vector<1x1x1xf32>
      %c7_i32 = arith.constant 7 : i32
      %139 = vector.broadcast %c7_i32 : i32 to vector<1x10xi32>
      %140 = arith.cmpi eq, %2, %139 : vector<1x10xi32>
      %141 = vector.broadcast %138 : f32 to vector<1x10xf32>
      %142 = arith.select %140, %141, %131 : vector<1x10xi1>, vector<1x10xf32>
      %c8 = arith.constant 8 : index
      %c0_57 = arith.constant 0 : index
      %c0_58 = arith.constant 0 : index
      %143 = vector.load %arg4[%c8, %c0_57, %c0_58] : memref<10x26x278xf32, #tpu.memory_space<vmem>>, vector<1x26x278xf32>
      %144 = vector.shape_cast %143 : vector<1x26x278xf32> to vector<26x278xf32>
      %145 = arith.mulf %53, %144 : vector<26x278xf32>
      %146 = vector.shape_cast %145 : vector<26x278xf32> to vector<1x26x278xf32>
      %cst_59 = arith.constant dense<0.000000e+00> : vector<1xf32>
      %147 = vector.multi_reduction <add>, %146, %cst_59 [1, 2] : vector<1x26x278xf32> to vector<1xf32>
      %148 = vector.shape_cast %147 : vector<1xf32> to vector<1x1x1xf32>
      %149 = vector.extract %148[0, 0, 0] : f32 from vector<1x1x1xf32>
      %c8_i32_60 = arith.constant 8 : i32
      %150 = vector.broadcast %c8_i32_60 : i32 to vector<1x10xi32>
      %151 = arith.cmpi eq, %2, %150 : vector<1x10xi32>
      %152 = vector.broadcast %149 : f32 to vector<1x10xf32>
      %153 = arith.select %151, %152, %142 : vector<1x10xi1>, vector<1x10xf32>
      %c9 = arith.constant 9 : index
      %c0_61 = arith.constant 0 : index
      %c0_62 = arith.constant 0 : index
      %154 = vector.load %arg4[%c9, %c0_61, %c0_62] : memref<10x26x278xf32, #tpu.memory_space<vmem>>, vector<1x26x278xf32>
      %155 = vector.shape_cast %154 : vector<1x26x278xf32> to vector<26x278xf32>
      %156 = arith.mulf %53, %155 : vector<26x278xf32>
      %157 = vector.shape_cast %156 : vector<26x278xf32> to vector<1x26x278xf32>
      %cst_63 = arith.constant dense<0.000000e+00> : vector<1xf32>
      %158 = vector.multi_reduction <add>, %157, %cst_63 [1, 2] : vector<1x26x278xf32> to vector<1xf32>
      %159 = vector.shape_cast %158 : vector<1xf32> to vector<1x1x1xf32>
      %160 = vector.extract %159[0, 0, 0] : f32 from vector<1x1x1xf32>
      %c9_i32 = arith.constant 9 : i32
      %161 = vector.broadcast %c9_i32 : i32 to vector<1x10xi32>
      %162 = arith.cmpi eq, %2, %161 : vector<1x10xi32>
      %163 = vector.broadcast %160 : f32 to vector<1x10xf32>
      %164 = arith.select %162, %163, %153 : vector<1x10xi1>, vector<1x10xf32>
      %165 = arith.addf %164, %1 : vector<1x10xf32>
      %166 = vector.broadcast %arg7 : i32 to vector<8x1xi32>
      %167 = arith.cmpi eq, %3, %166 : vector<8x1xi32>
      %168 = vector.shape_cast %167 : vector<8x1xi1> to vector<8x1xi1>
      %169 = vector.broadcast %168 : vector<8x1xi1> to vector<8x10xi1>
      %170 = vector.shape_cast %165 : vector<1x10xf32> to vector<1x10xf32>
      %171 = vector.broadcast %170 : vector<1x10xf32> to vector<8x10xf32>
      %172 = arith.select %169, %171, %arg8 : vector<8x10xi1>, vector<8x10xf32>
      scf.yield %172 : vector<8x10xf32>
    }
    %c8_i32_3 = arith.constant 8 : i32
    %c0_4 = arith.constant 0 : index
    %c0_5 = arith.constant 0 : index
    %7 = vector.load %arg6[%c0_4, %c0_5] : memref<8x10xf32, #tpu.memory_space<vmem>>, vector<8x10xf32>
    tpu.vector_store %arg6[%c0_4, %c0_5], %6 {strides = array<i32>} : memref<8x10xf32, #tpu.memory_space<vmem>>, vector<8x10xf32>,
    return
  }
  func.func @transform_0(%arg0: i32) -> (i32, i32, i32) {
    %c0_i32 = arith.constant 0 : i32
    %c0_i32_0 = arith.constant 0 : i32
    %c0_i32_1 = arith.constant 0 : i32
    return %arg0, %c0_i32, %c0_i32_0 : i32, i32, i32
  }
  func.func @transform_1(%arg0: i32) -> (i32, i32, i32) {
    %c0_i32 = arith.constant 0 : i32
    %c0_i32_0 = arith.constant 0 : i32
    %c0_i32_1 = arith.constant 0 : i32
    %c0_i32_2 = arith.constant 0 : i32
    return %c0_i32, %c0_i32_0, %c0_i32_1 : i32, i32, i32
  }
  func.func @transform_2(%arg0: i32) -> (i32, i32) {
    %c0_i32 = arith.constant 0 : i32
    %c0_i32_0 = arith.constant 0 : i32
    %c0_i32_1 = arith.constant 0 : i32
    return %c0_i32, %c0_i32_0 : i32, i32
  }
  func.func @transform_3(%arg0: i32) -> (i32, i32, i32) {
    %c0_i32 = arith.constant 0 : i32
    %c0_i32_0 = arith.constant 0 : i32
    %c0_i32_1 = arith.constant 0 : i32
    %c0_i32_2 = arith.constant 0 : i32
    return %c0_i32, %c0_i32_0, %c0_i32_1 : i32, i32, i32
  }
  func.func @transform_4(%arg0: i32) -> (i32, i32) {
    %c0_i32 = arith.constant 0 : i32
    %c0_i32_0 = arith.constant 0 : i32
    %c0_i32_1 = arith.constant 0 : i32
    return %c0_i32, %c0_i32_0 : i32, i32
  }
  func.func @transform_5(%arg0: i32) -> (i32, i32) {
    %c0_i32 = arith.constant 0 : i32
    %c0_i32_0 = arith.constant 0 : i32
    return %arg0, %c0_i32 : i32, i32
  }
}

</mosaic_0001>

<llo_original>
// kernel: simple_cnn_forward.1
$region0: #{simple_cnn_forward.1}
  #allocation0 [shape = 'u32[]', space=smem, size = 0x4, offset = 0x4, fixed_abs, tag = 'smem constant byte address 0x4 - core index']
  #allocation1 [shape = 'u32[72,128]{1,0:T(1,128)}', space=vmem, size = 0x9000, scoped, tag = 'internal scratch']
  %s0 = inlined_call_operand.hbm [shape: f32[16,32,32], index: 0, kind: input, shape index: {}]
  %s1 = inlined_call_operand.hbm [shape: bf16[5,32,280], index: 1, kind: input, shape index: {}]
  %s2 = inlined_call_operand.hbm [shape: f32[1,280], index: 2, kind: input, shape index: {}]
  %s3 = inlined_call_operand.hbm [shape: f32[10,26,278], index: 3, kind: input, shape index: {}]
  %s4 = inlined_call_operand.vmem [shape: f32[1,10], index: 4, kind: input, shape index: {}]
  %s5 = inlined_call_operand.hbm [shape: f32[16,10], index: 5, kind: output, shape index: {}]
  %s6 = sld [smem:[#allocation0]]
  $region76: #{simple_cnn_forward.1} parent=0
    _
  %s8 = ssub.s32 1, %s6
  %s9 = scalar_select 0, %s8, %s6
  $region1: #{simple_cnn_forward.1} parent=0
    #allocation2 [shape = 'u8[262144]{0}', space=vmem, size = 0x40000, scoped, tag = 'input window, operand 0']
    #allocation3 [shape = 's32[2]{0}', space=sflag, size = 0x8, scoped, tag = 'scoped memory for simple_cnn_forward.1']
    #allocation4 [shape = 's32[2]{0}', space=sflag, size = 0x8, scoped, tag = 'scoped memory for simple_cnn_forward.1']
    #allocation5 [shape = 'u8[122880]{0}', space=vmem, size = 0x1e000, scoped, tag = 'input window, operand 1, single buffered']
    #allocation6 [shape = 's32[1]{0}', space=sflag, size = 0x4, scoped, tag = 'scoped memory for simple_cnn_forward.1']
    #allocation7 [shape = 'u8[1536]{0}', space=vmem, size = 0x800, scoped, tag = 'input window, operand 2, single buffered']
    #allocation8 [shape = 'u8[491520]{0}', space=vmem, size = 0x78000, scoped, tag = 'input window, operand 3, single buffered']
    #allocation9 [shape = 's32[1]{0}', space=sflag, size = 0x4, scoped, tag = 'scoped memory for simple_cnn_forward.1']
    #allocation10 [shape = 'u8[8192]{0}', space=vmem, size = 0x2000, scoped, tag = 'output window, operand 0']
    %10 = vsyncpa [#allocation3], 0
    %s11 = scalar_lea.sflag [#allocation3], 1
    %12 = vsyncpa %s11, 0
    %13 = vsyncpa [#allocation6], 0
    %14 = vsyncpa [#allocation9], 0
    %15 = vsyncpa [#allocation4], 0
    %s16 = scalar_lea.sflag [#allocation4], 1
    %17 = vsyncpa %s16, 0
    loop: start=0, step=1, limit=4
    $region2: #{simple_cnn_forward.1} parent=1 // loop_pre_header
      _
    $region3: #{simple_cnn_forward.1} parent=1 // loop_header
      %s19 = sphi 0, %s23
      %p20 = scmp.ge.s32.totalorder %s19, 4
      %s29 = sphi 0, %s31
      %s32 = sphi 0, %s29
      %s33 = sphi 0, %s32
      %s49 = sphi 0, %s33
      %s53 = sphi 0, %s53
      %s55 = sphi 0, %s53
      %s56 = sphi 0, %s55
      %s70 = sphi 0, %s56
      %s74 = sphi 0, %s74
      %s76 = sphi 0, %s74
      %s77 = sphi 0, %s76
      %s91 = sphi 0, %s77
      %s95 = sphi 0, %s95
      %s97 = sphi 0, %s95
      %s98 = sphi 0, %s97
      %s112 = sphi 0, %s98
      %s116 = sphi 0, %s116
      %s118 = sphi 0, %s116
      %s119 = sphi 0, %s118
      %s133 = sphi 0, %s119
      %s139 = sphi 0, %s141
      %s142 = sphi 0, %s139
      %s143 = sphi 0, %s142
      %s159 = sphi 0, %s143
    $region4: #{simple_cnn_forward.1} parent=1 // loop_header_branch
      %22 = sbr.rel (%p20) target = $region8
    $region5: #{simple_cnn_forward.1} parent=1 // loop_body
      %s24 = ssub.s32 %s19, 1
      %s25 = ssub.s32 %s19, 2
      %s26 = sadd.s32 %s19, 1
      %s27 = ssub.s32 %s19, %s26
      %p28 = scmp.eq.s32.totalorder %s27, 0
      %s30 = sadd.s32 %s29, 1
      %s31 = scalar_select %p28, %s29, %s30
      %p34 = pneg %p28
      %p35 = scmp.eq.s32.totalorder %s19, 1
      %p36 = por %p34, %p35
      %p37 = scmp.ne.s32.totalorder %s29, %s32
      %p38 = scmp.eq.s32.totalorder %s19, 0
      %p39 = por %p37, %p38
      %p40 = scmp.ne.s32.totalorder %s29, %s32
      %p41 = scmp.eq.s32.totalorder %s24, 1
      %p42 = por %p40, %p41
      %p43 = scmp.ne.s32.totalorder %s32, %s33
      %p44 = scmp.eq.s32.totalorder %s24, 0
      %p45 = por %p43, %p44
      %p46 = scmp.ne.s32.totalorder %s32, %s33
      %p47 = scmp.eq.s32.totalorder %s25, 1
      %p48 = por %p46, %p47
      %p50 = scmp.ne.s32.totalorder %s33, %s49
      %p51 = scmp.eq.s32.totalorder %s25, 0
      %p52 = por %p50, %p51
      %s54 = sadd.s32 %s53, 1
      %p57 = scmp.eq.s32.totalorder %s19, 1
      %p58 = scmp.ne.s32.totalorder %s53, %s55
      %p59 = scmp.eq.s32.totalorder %s19, 0
      %p60 = por %p58, %p59
      %p61 = scmp.ne.s32.totalorder %s53, %s55
      %p62 = scmp.eq.s32.totalorder %s24, 1
      %p63 = por %p61, %p62
      %p64 = scmp.ne.s32.totalorder %s55, %s56
      %p65 = scmp.eq.s32.totalorder %s24, 0
      %p66 = por %p64, %p65
      %p67 = scmp.ne.s32.totalorder %s55, %s56
      %p68 = scmp.eq.s32.totalorder %s25, 1
      %p69 = por %p67, %p68
      %p71 = scmp.ne.s32.totalorder %s56, %s70
      %p72 = scmp.eq.s32.totalorder %s25, 0
      %p73 = por %p71, %p72
      %s75 = sadd.s32 %s74, 1
      %p78 = scmp.eq.s32.totalorder %s19, 1
      %p79 = scmp.ne.s32.totalorder %s74, %s76
      %p80 = scmp.eq.s32.totalorder %s19, 0
      %p81 = por %p79, %p80
      %p82 = scmp.ne.s32.totalorder %s74, %s76
      %p83 = scmp.eq.s32.totalorder %s24, 1
      %p84 = por %p82, %p83
      %p85 = scmp.ne.s32.totalorder %s76, %s77
      %p86 = scmp.eq.s32.totalorder %s24, 0
      %p87 = por %p85, %p86
      %p88 = scmp.ne.s32.totalorder %s76, %s77
      %p89 = scmp.eq.s32.totalorder %s25, 1
      %p90 = por %p88, %p89
      %p92 = scmp.ne.s32.totalorder %s77, %s91
      %p93 = scmp.eq.s32.totalorder %s25, 0
      %p94 = por %p92, %p93
      %s96 = sadd.s32 %s95, 1
      %p99 = scmp.eq.s32.totalorder %s19, 1
      %p100 = scmp.ne.s32.totalorder %s95, %s97
      %p101 = scmp.eq.s32.totalorder %s19, 0
      %p102 = por %p100, %p101
      %p103 = scmp.ne.s32.totalorder %s95, %s97
      %p104 = scmp.eq.s32.totalorder %s24, 1
      %p105 = por %p103, %p104
      %p106 = scmp.ne.s32.totalorder %s97, %s98
      %p107 = scmp.eq.s32.totalorder %s24, 0
      %p108 = por %p106, %p107
      %p109 = scmp.ne.s32.totalorder %s97, %s98
      %p110 = scmp.eq.s32.totalorder %s25, 1
      %p111 = por %p109, %p110
      %p113 = scmp.ne.s32.totalorder %s98, %s112
      %p114 = scmp.eq.s32.totalorder %s25, 0
      %p115 = por %p113, %p114
      %s117 = sadd.s32 %s116, 1
      %p120 = scmp.eq.s32.totalorder %s19, 1
      %p121 = scmp.ne.s32.totalorder %s116, %s118
      %p122 = scmp.eq.s32.totalorder %s19, 0
      %p123 = por %p121, %p122
      %p124 = scmp.ne.s32.totalorder %s116, %s118
      %p125 = scmp.eq.s32.totalorder %s24, 1
      %p126 = por %p124, %p125
      %p127 = scmp.ne.s32.totalorder %s118, %s119
      %p128 = scmp.eq.s32.totalorder %s24, 0
      %p129 = por %p127, %p128
      %p130 = scmp.ne.s32.totalorder %s118, %s119
      %p131 = scmp.eq.s32.totalorder %s25, 1
      %p132 = por %p130, %p131
      %p134 = scmp.ne.s32.totalorder %s119, %s133
      %p135 = scmp.eq.s32.totalorder %s25, 0
      %p136 = por %p134, %p135
      %s137 = ssub.s32 %s19, %s26
      %p138 = scmp.eq.s32.totalorder %s137, 0
      %s140 = sadd.s32 %s139, 1
      %s141 = scalar_select %p138, %s139, %s140
      %p144 = pneg %p138
      %p145 = scmp.eq.s32.totalorder %s19, 1
      %p146 = por %p144, %p145
      %p147 = scmp.ne.s32.totalorder %s139, %s142
      %p148 = scmp.eq.s32.totalorder %s19, 0
      %p149 = por %p147, %p148
      %p150 = scmp.ne.s32.totalorder %s139, %s142
      %p151 = scmp.eq.s32.totalorder %s24, 1
      %p152 = por %p150, %p151
      %p153 = scmp.ne.s32.totalorder %s142, %s143
      %p154 = scmp.eq.s32.totalorder %s24, 0
      %p155 = por %p153, %p154
      %p156 = scmp.ne.s32.totalorder %s142, %s143
      %p157 = scmp.eq.s32.totalorder %s25, 1
      %p158 = por %p156, %p157
      %p160 = scmp.ne.s32.totalorder %s143, %s159
      %p161 = scmp.eq.s32.totalorder %s25, 0
      %p162 = por %p160, %p161
      %p163 = scmp.le.s32.totalorder 1, %s19
      %p164 = scmp.lt.s32.totalorder %s19, 3
      %p165 = pnand %p163, %p164
      %p166 = pneg %p165
      // Predicated region
      $region9: #{simple_cnn_forward.1} parent=5 // pred_check
        _
      $region10: #{simple_cnn_forward.1} parent=5 // pred_check_branch
        %168 = sbr.rel (%p165) target = $region12
      $region11: #{simple_cnn_forward.1} parent=5 // pred_region
        %s169 = ssub.s32 %s19, 1
        // Predicated region
        $region13: #{simple_cnn_forward.1} parent=11 // pred_check
          %p170 = pneg %p66
        $region14: #{simple_cnn_forward.1} parent=11 // pred_check_branch
          %172 = sbr.rel (%p170) target = $region16
        $region15: #{simple_cnn_forward.1} parent=11 // pred_region
          %174 = vsyncadd [#allocation6], 0
          %s175 = sshll.u32 %s1, 4
          %s176 = int_to_ptr.hbm [resolvable:$true] %s175
          %s177 = sshll.u32 [#allocation5], 4
          %s178 = int_to_ptr.vmem [resolvable:$true] %s177
          %183 = dma.hbm_to_vmem [thread:$0]  %s176, 3840, %s178, [#allocation6], 192, 192, 12
        $region16: #{simple_cnn_forward.1} parent=11 // pred_fallthru
          _
        // Predicated region
        $region17: #{simple_cnn_forward.1} parent=11 // pred_check
          %p184 = pneg %p87
        $region18: #{simple_cnn_forward.1} parent=11 // pred_check_branch
          %186 = sbr.rel (%p184) target = $region20
        $region19: #{simple_cnn_forward.1} parent=11 // pred_region
          %188 = vsyncadd [#allocation6], 0
          %s190 = sshll.u32 %s2, 4
          %s191 = int_to_ptr.hbm [resolvable:$true] %s190
          %s192 = sshll.u32 [#allocation7], 4
          %s193 = int_to_ptr.vmem [resolvable:$true] %s192
          %195 = dma.hbm_to_vmem [thread:$0]  %s191, 48, %s193, [#allocation6]
        $region20: #{simple_cnn_forward.1} parent=11 // pred_fallthru
          _
        // Predicated region
        $region21: #{simple_cnn_forward.1} parent=11 // pred_check
          %p196 = pneg %p108
        $region22: #{simple_cnn_forward.1} parent=11 // pred_check_branch
          %198 = sbr.rel (%p196) target = $region24
        $region23: #{simple_cnn_forward.1} parent=11 // pred_region
          %200 = vsyncadd [#allocation9], 0
          %s201 = sshll.u32 %s3, 4
          %s202 = int_to_ptr.hbm [resolvable:$true] %s201
          %s203 = sshll.u32 [#allocation8], 4
          %s204 = int_to_ptr.vmem [resolvable:$true] %s203
          %209 = dma.hbm_to_vmem [thread:$0]  %s202, 15360, %s204, [#allocation9], 384, 384, 24
        $region24: #{simple_cnn_forward.1} parent=11 // pred_fallthru
          _
        // Predicated region
        $region25: #{simple_cnn_forward.1} parent=11 // pred_check
          %p210 = pneg %p129
        $region26: #{simple_cnn_forward.1} parent=11 // pred_check_branch
          %212 = sbr.rel (%p210) target = $region28
        $region27: #{simple_cnn_forward.1} parent=11 // pred_region
          _
        $region28: #{simple_cnn_forward.1} parent=11 // pred_fallthru
          _
      $region12: #{simple_cnn_forward.1} parent=5 // pred_fallthru
        _
      %p213 = scmp.lt.s32.totalorder %s19, 2
      // Predicated region
      $region29: #{simple_cnn_forward.1} parent=5 // pred_check
        %p214 = pneg %p213
      $region30: #{simple_cnn_forward.1} parent=5 // pred_check_branch
        %216 = sbr.rel (%p214) target = $region32
      $region31: #{simple_cnn_forward.1} parent=5 // pred_region
        // Predicated region
        $region33: #{simple_cnn_forward.1} parent=31 // pred_check
          %p217 = pneg %p39
        $region34: #{simple_cnn_forward.1} parent=31 // pred_check_branch
          %219 = sbr.rel (%p217) target = $region36
        $region35: #{simple_cnn_forward.1} parent=31 // pred_region
          %s220 = sand.u32 %s29, 1
          %s221 = scalar_lea.sflag [#allocation3], %s220
          %s222 = sand.u32 %s29, 1
          %s223 = smul.addr %s222, 256
          %s224 = scalar_lea.vmem [#allocation2], %s223
          %s225 = smul.u32 8, %s19
          %227 = vsyncadd %s221, 0
          %s228 = smul.addr %s225, 4
          %s229 = smul.addr %s228, 8
          %s230 = scalar_lea.hbm %s0, %s229
          %s231 = sshll.u32 %s230, 4
          %s232 = int_to_ptr.hbm [resolvable:$true] %s231
          %s233 = sshll.u32 %s224, 4
          %s234 = int_to_ptr.vmem [resolvable:$true] %s233
          %239 = dma.hbm_to_vmem [thread:$0]  %s232, 4096, %s234, %s221, 128, 128, 8
        $region36: #{simple_cnn_forward.1} parent=31 // pred_fallthru
          _
      $region32: #{simple_cnn_forward.1} parent=5 // pred_fallthru
        _
      %p240 = scmp.le.s32.totalorder 1, %s19
      %p241 = scmp.lt.s32.totalorder %s19, 3
      %p242 = pnand %p240, %p241
      %p243 = pneg %p242
      // Predicated region
      $region37: #{simple_cnn_forward.1} parent=5 // pred_check
        _
      $region38: #{simple_cnn_forward.1} parent=5 // pred_check_branch
        %245 = sbr.rel (%p242) target = $region40
      $region39: #{simple_cnn_forward.1} parent=5 // pred_region
        %s246 = ssub.s32 %s19, 1
        %s247 = sand.u32 %s32, 1
        %s248 = scalar_lea.sflag [#allocation3], %s247
        %s249 = sand.u32 %s32, 1
        %s250 = smul.addr %s249, 256
        %s251 = scalar_lea.vmem [#allocation2], %s250
        // Predicated region
        $region41: #{simple_cnn_forward.1} parent=39 // pred_check
          %p252 = pneg %p45
        $region42: #{simple_cnn_forward.1} parent=39 // pred_check_branch
          %254 = sbr.rel (%p252) target = $region44
        $region43: #{simple_cnn_forward.1} parent=39 // pred_region
          %256 = dma.done %s248, 4096
        $region44: #{simple_cnn_forward.1} parent=39 // pred_fallthru
          _
        // Predicated region
        $region45: #{simple_cnn_forward.1} parent=39 // pred_check
          %p257 = pneg %p66
        $region46: #{simple_cnn_forward.1} parent=39 // pred_check_branch
          %259 = sbr.rel (%p257) target = $region48
        $region47: #{simple_cnn_forward.1} parent=39 // pred_region
          %261 = dma.done [#allocation6], 3840
        $region48: #{simple_cnn_forward.1} parent=39 // pred_fallthru
          _
        // Predicated region
        $region49: #{simple_cnn_forward.1} parent=39 // pred_check
          %p262 = pneg %p87
        $region50: #{simple_cnn_forward.1} parent=39 // pred_check_branch
          %264 = sbr.rel (%p262) target = $region52
        $region51: #{simple_cnn_forward.1} parent=39 // pred_region
          %266 = dma.done [#allocation6], 48
        $region52: #{simple_cnn_forward.1} parent=39 // pred_fallthru
          _
        // Predicated region
        $region53: #{simple_cnn_forward.1} parent=39 // pred_check
          %p267 = pneg %p108
        $region54: #{simple_cnn_forward.1} parent=39 // pred_check_branch
          %269 = sbr.rel (%p267) target = $region56
        $region55: #{simple_cnn_forward.1} parent=39 // pred_region
          %271 = dma.done [#allocation9], 15360
        $region56: #{simple_cnn_forward.1} parent=39 // pred_fallthru
          _
        %s272 = sand.u32 %s32, 1
        %s273 = scalar_lea.sflag [#allocation3], %s272
        %s274 = sand.u32 %s32, 1
        %s275 = smul.addr %s274, 256
        %s276 = scalar_lea.vmem [#allocation2], %s275
        %p277 = pneg %p45
        %p278 = pneg %p42
        %p279 = pneg %p66
        %p280 = pneg %p63
        %p281 = pneg %p87
        %p282 = pneg %p84
        %p283 = pneg %p108
        %p284 = pneg %p105
        %p285 = pneg %p129
        %p286 = pneg %p126
        %p287 = pneg %p155
        %p288 = pneg %p152
        %s289 = sand.u32 %s142, 1
        %s290 = scalar_lea.sflag [#allocation4], %s289
        %s291 = sand.u32 %s142, 1
        %s292 = smul.addr %s291, 8
        %s293 = scalar_lea.vmem [#allocation10], %s292
        %s294 = smul.u32 8, %s24
        %v296 = vld [vmem:[#allocation7] sm:$0x7]
        %v297 = vld [vmem:[%s4] sm:$0x1]
        %v298 = vlaneseq
        %v299 = vand.u32 %v298, 127
        %v300 = vlaneseq
        %v301 = vshrl.u32 %v300, 7
        loop: start=0, step=1, limit=8
        $region57: #{simple_cnn_forward.1} parent=39 // loop_pre_header
          _
        $region58: #{simple_cnn_forward.1} parent=39 // loop_header
          %s303 = sphi 0, %s307
          %p304 = scmp.ge.s32.totalorder %s303, 8
          %v308 = vphi 0.0, %v1714
        $region59: #{simple_cnn_forward.1} parent=39 // loop_header_branch
          %306 = sbr.rel (%p304) target = $region63
        $region60: #{simple_cnn_forward.1} parent=39 // loop_body
          %s309 = smul.u32 %s303, 32
          %s310 = scalar_lea.vmem %s251, %s309 [#allocation2]
          %v311 = vld [vmem:[%s310] sm:$0xff]
          %v312 = vld [vmem:[%s310 + $0x8] sm:$0xff]
          %v313 = vld [vmem:[%s310 + $0x10] sm:$0xff]
          %v314 = vld [vmem:[%s310 + $0x18] sm:$0xff]
          %v315 = vpack.c.bf16 %v312, %v311
          %v316 = vpack.c.bf16 %v314, %v313
          %v317 = vld [vmem:[#allocation5] sm:$0xff]
          %v318 = vld [vmem:[#allocation5 + $0x8] sm:$0xf]
          %v319 = vld [vmem:[#allocation5 + $0xc] sm:$0xff]
          %v320 = vld [vmem:[#allocation5 + $0x14] sm:$0xf]
          %v321 = vld [vmem:[#allocation5 + $0x18] sm:$0xff]
          %v322 = vld [vmem:[#allocation5 + $0x20] sm:$0xf]
          %v323 = vld [vmem:[#allocation5 + $0x24] sm:$0xff]
          %v324 = vld [vmem:[#allocation5 + $0x2c] sm:$0xf]
          %s325 = scalar_lea.vmem [#allocation5], 48
          %v326 = vld [vmem:[%s325] sm:$0xff]
          %v327 = vld [vmem:[%s325 + $0x8] sm:$0xf]
          %v328 = vld [vmem:[%s325 + $0xc] sm:$0xff]
          %v329 = vld [vmem:[%s325 + $0x14] sm:$0xf]
          %v330 = vld [vmem:[%s325 + $0x18] sm:$0xff]
          %v331 = vld [vmem:[%s325 + $0x20] sm:$0xf]
          %v332 = vld [vmem:[%s325 + $0x24] sm:$0xff]
          %v333 = vld [vmem:[%s325 + $0x2c] sm:$0xf]
          %vm334 = vsmask.f32 7424
          %v336 = vshrl.u32 %v315, 16
          %v338 = vshll.u32 %v315, 16
          %v340 = vrot.slane %v338, 1
          %v341 = vor.u32 %v336, %v340
          %v343 = vshll.u32 %v316, 16
          %v345 = vrot.slane %v343, 1
          %v346 = vsel %vm334, %v341, %v345
          %v347 = vshrl.u32 %v316, 16
          %v349 = vor.u32 %v347, %v345
          %v358 = vunpack.c.l.b16 %v326
          %v359 = vunpack.c.h.b16 %v326
          %v360 = vunpack.c.l.b16 %v327
          %v361 = vunpack.c.l.b16 %v328
          %v362 = vunpack.c.h.b16 %v328
          %v363 = vunpack.c.l.b16 %v329
          %v364 = vunpack.c.l.b16 %v330
          %v365 = vunpack.c.h.b16 %v330
          %v366 = vunpack.c.l.b16 %v331
          %v367 = vunpack.c.l.b16 %v332
          %v368 = vunpack.c.h.b16 %v332
          %v369 = vunpack.c.l.b16 %v333
          %v370 = vpack.c.b16 %v361, %v358
          %v371 = vpack.c.b16 %v362, %v359
          %v372 = vpack.c.b16 %v363, %v360
          %v373 = vpack.c.b16 %v367, %v364
          %v374 = vpack.c.b16 %v368, %v365
          %v375 = vpack.c.b16 %v369, %v366
          %vm382 = vcmask 261120
          %v384 = vsel %vm382, %v346, 0
          %v387 = vsel %vm382, %v349, 0
          %389 = vmatpush.bf16.msra.mxu0 0
          %390 = vmatpush.bf16.msra.mxu0 0
          %391 = vmatpush.bf16.msra.mxu0 0
          %392 = vmatpush.bf16.msra.mxu0 0
          %393 = vmatpush.bf16.msra.mxu0 0
          %394 = vmatpush.bf16.msra.mxu0 0
          %395 = vmatpush.bf16.msra.mxu0 %v373
          %396 = vmatpush.bf16.msra.mxu0 %v370
          %397 = vmatmul.bf16.gmra.mxu0 %v384
          %v398 = vpop.f32.mrf.mxu0
          %v399 = vadd.f32 0.0, %v398
          %v400 = vpop.f32.mrf.mxu0
          %v401 = vadd.f32 0.0, %v400
          %402 = vmatmul.bf16.gmra.mxu0 %v387
          %v403 = vpop.f32.mrf.mxu0
          %v404 = vadd.f32 0.0, %v403
          %v405 = vpop.f32.mrf.mxu0
          %v406 = vadd.f32 0.0, %v405
          %407 = vdwg.mxu0
          %408 = vmatpush.bf16.msra.mxu0 0
          %409 = vmatpush.bf16.msra.mxu0 0
          %410 = vmatpush.bf16.msra.mxu0 0
          %411 = vmatpush.bf16.msra.mxu0 0
          %412 = vmatpush.bf16.msra.mxu0 0
          %413 = vmatpush.bf16.msra.mxu0 0
          %414 = vmatpush.bf16.msra.mxu0 %v374
          %415 = vmatpush.bf16.msra.mxu0 %v371
          %416 = vmatmul.bf16.gmra.mxu0 %v384
          %v417 = vpop.f32.mrf.mxu0
          %v418 = vadd.f32 0.0, %v417
          %v419 = vpop.f32.mrf.mxu0
          %v420 = vadd.f32 0.0, %v419
          %421 = vmatmul.bf16.gmra.mxu0 %v387
          %v422 = vpop.f32.mrf.mxu0
          %v423 = vadd.f32 0.0, %v422
          %v424 = vpop.f32.mrf.mxu0
          %v425 = vadd.f32 0.0, %v424
          %426 = vdwg.mxu0
          %427 = vmatpush.bf16.msra.mxu0 0
          %428 = vmatpush.bf16.msra.mxu0 0
          %429 = vmatpush.bf16.msra.mxu0 0
          %430 = vmatpush.bf16.msra.mxu0 0
          %431 = vmatpush.bf16.msra.mxu0 0
          %432 = vmatpush.bf16.msra.mxu0 0
          %433 = vmatpush.bf16.msra.mxu0 %v375
          %434 = vmatpush.bf16.msra.mxu0 %v372
          %435 = vmatmul.bf16.gmra.mxu0 %v384
          %v436 = vpop.f32.mrf.mxu0
          %v437 = vadd.f32 0.0, %v436
          %v438 = vpop.f32.mrf.mxu0
          %v439 = vadd.f32 0.0, %v438
          %440 = vmatmul.bf16.gmra.mxu0 %v387
          %v441 = vpop.f32.mrf.mxu0
          %v442 = vadd.f32 0.0, %v441
          %v443 = vpop.f32.mrf.mxu0
          %v444 = vadd.f32 0.0, %v443
          %445 = vdwg.mxu0
          %v454 = vunpack.c.l.b16 %v317
          %v455 = vunpack.c.h.b16 %v317
          %v456 = vunpack.c.l.b16 %v318
          %v457 = vunpack.c.l.b16 %v319
          %v458 = vunpack.c.h.b16 %v319
          %v459 = vunpack.c.l.b16 %v320
          %v460 = vunpack.c.l.b16 %v321
          %v461 = vunpack.c.h.b16 %v321
          %v462 = vunpack.c.l.b16 %v322
          %v463 = vunpack.c.l.b16 %v323
          %v464 = vunpack.c.h.b16 %v323
          %v465 = vunpack.c.l.b16 %v324
          %v466 = vpack.c.b16 %v457, %v454
          %v467 = vpack.c.b16 %v458, %v455
          %v468 = vpack.c.b16 %v459, %v456
          %v469 = vpack.c.b16 %v463, %v460
          %v470 = vpack.c.b16 %v464, %v461
          %v471 = vpack.c.b16 %v465, %v462
          %v478 = vsel %vm382, %v315, 0
          %v480 = vsel %vm382, %v316, 0
          %482 = vmatpush.bf16.msra.mxu0 0
          %483 = vmatpush.bf16.msra.mxu0 0
          %484 = vmatpush.bf16.msra.mxu0 0
          %485 = vmatpush.bf16.msra.mxu0 0
          %486 = vmatpush.bf16.msra.mxu0 0
          %487 = vmatpush.bf16.msra.mxu0 0
          %488 = vmatpush.bf16.msra.mxu0 %v469
          %489 = vmatpush.bf16.msra.mxu0 %v466
          %490 = vmatmul.bf16.gmra.mxu0 %v478
          %v491 = vpop.f32.mrf.mxu0
          %v492 = vadd.f32 %v399, %v491
          %v493 = vpop.f32.mrf.mxu0
          %v494 = vadd.f32 %v401, %v493
          %495 = vmatmul.bf16.gmra.mxu0 %v480
          %v496 = vpop.f32.mrf.mxu0
          %v497 = vadd.f32 %v404, %v496
          %v498 = vpop.f32.mrf.mxu0
          %v499 = vadd.f32 %v406, %v498
          %500 = vdwg.mxu0
          %501 = vmatpush.bf16.msra.mxu0 0
          %502 = vmatpush.bf16.msra.mxu0 0
          %503 = vmatpush.bf16.msra.mxu0 0
          %504 = vmatpush.bf16.msra.mxu0 0
          %505 = vmatpush.bf16.msra.mxu0 0
          %506 = vmatpush.bf16.msra.mxu0 0
          %507 = vmatpush.bf16.msra.mxu0 %v470
          %508 = vmatpush.bf16.msra.mxu0 %v467
          %509 = vmatmul.bf16.gmra.mxu0 %v478
          %v510 = vpop.f32.mrf.mxu0
          %v511 = vadd.f32 %v418, %v510
          %v512 = vpop.f32.mrf.mxu0
          %v513 = vadd.f32 %v420, %v512
          %514 = vmatmul.bf16.gmra.mxu0 %v480
          %v515 = vpop.f32.mrf.mxu0
          %v516 = vadd.f32 %v423, %v515
          %v517 = vpop.f32.mrf.mxu0
          %v518 = vadd.f32 %v425, %v517
          %519 = vdwg.mxu0
          %520 = vmatpush.bf16.msra.mxu0 0
          %521 = vmatpush.bf16.msra.mxu0 0
          %522 = vmatpush.bf16.msra.mxu0 0
          %523 = vmatpush.bf16.msra.mxu0 0
          %524 = vmatpush.bf16.msra.mxu0 0
          %525 = vmatpush.bf16.msra.mxu0 0
          %526 = vmatpush.bf16.msra.mxu0 %v471
          %527 = vmatpush.bf16.msra.mxu0 %v468
          %528 = vmatmul.bf16.gmra.mxu0 %v478
          %v529 = vpop.f32.mrf.mxu0
          %v530 = vadd.f32 %v437, %v529
          %v531 = vpop.f32.mrf.mxu0
          %v532 = vadd.f32 %v439, %v531
          %533 = vmatmul.bf16.gmra.mxu0 %v480
          %v534 = vpop.f32.mrf.mxu0
          %v535 = vadd.f32 %v442, %v534
          %v536 = vpop.f32.mrf.mxu0
          %v537 = vadd.f32 %v444, %v536
          %538 = vdwg.mxu0
          %s539 = scalar_lea.vmem [#allocation5], 96
          %v540 = vld [vmem:[%s539] sm:$0xff]
          %v541 = vld [vmem:[%s539 + $0x8] sm:$0xf]
          %v542 = vld [vmem:[%s539 + $0xc] sm:$0xff]
          %v543 = vld [vmem:[%s539 + $0x14] sm:$0xf]
          %v544 = vld [vmem:[%s539 + $0x18] sm:$0xff]
          %v545 = vld [vmem:[%s539 + $0x20] sm:$0xf]
          %v546 = vld [vmem:[%s539 + $0x24] sm:$0xff]
          %v547 = vld [vmem:[%s539 + $0x2c] sm:$0xf]
          %vm550 = vcmask 1046528
          %v551 = vrot.slane %v315, 1
          %v552 = vrot.slane %v316, 1
          %v553 = vsel %vm550, %v551, %v552
          %v562 = vunpack.c.l.b16 %v540
          %v563 = vunpack.c.h.b16 %v540
          %v564 = vunpack.c.l.b16 %v541
          %v565 = vunpack.c.l.b16 %v542
          %v566 = vunpack.c.h.b16 %v542
          %v567 = vunpack.c.l.b16 %v543
          %v568 = vunpack.c.l.b16 %v544
          %v569 = vunpack.c.h.b16 %v544
          %v570 = vunpack.c.l.b16 %v545
          %v571 = vunpack.c.l.b16 %v546
          %v572 = vunpack.c.h.b16 %v546
          %v573 = vunpack.c.l.b16 %v547
          %v574 = vpack.c.b16 %v565, %v562
          %v575 = vpack.c.b16 %v566, %v563
          %v576 = vpack.c.b16 %v567, %v564
          %v577 = vpack.c.b16 %v571, %v568
          %v578 = vpack.c.b16 %v572, %v569
          %v579 = vpack.c.b16 %v573, %v570
          %v587 = vsel %vm382, %v553, 0
          %v590 = vsel %vm382, %v552, 0
          %592 = vmatpush.bf16.msra.mxu0 0
          %593 = vmatpush.bf16.msra.mxu0 0
          %594 = vmatpush.bf16.msra.mxu0 0
          %595 = vmatpush.bf16.msra.mxu0 0
          %596 = vmatpush.bf16.msra.mxu0 0
          %597 = vmatpush.bf16.msra.mxu0 0
          %598 = vmatpush.bf16.msra.mxu0 %v577
          %599 = vmatpush.bf16.msra.mxu0 %v574
          %600 = vmatmul.bf16.gmra.mxu0 %v587
          %v601 = vpop.f32.mrf.mxu0
          %v602 = vadd.f32 0.0, %v601
          %v603 = vpop.f32.mrf.mxu0
          %v604 = vadd.f32 0.0, %v603
          %605 = vmatmul.bf16.gmra.mxu0 %v590
          %v606 = vpop.f32.mrf.mxu0
          %v607 = vadd.f32 0.0, %v606
          %v608 = vpop.f32.mrf.mxu0
          %v609 = vadd.f32 0.0, %v608
          %610 = vdwg.mxu0
          %611 = vmatpush.bf16.msra.mxu0 0
          %612 = vmatpush.bf16.msra.mxu0 0
          %613 = vmatpush.bf16.msra.mxu0 0
          %614 = vmatpush.bf16.msra.mxu0 0
          %615 = vmatpush.bf16.msra.mxu0 0
          %616 = vmatpush.bf16.msra.mxu0 0
          %617 = vmatpush.bf16.msra.mxu0 %v578
          %618 = vmatpush.bf16.msra.mxu0 %v575
          %619 = vmatmul.bf16.gmra.mxu0 %v587
          %v620 = vpop.f32.mrf.mxu0
          %v621 = vadd.f32 0.0, %v620
          %v622 = vpop.f32.mrf.mxu0
          %v623 = vadd.f32 0.0, %v622
          %624 = vmatmul.bf16.gmra.mxu0 %v590
          %v625 = vpop.f32.mrf.mxu0
          %v626 = vadd.f32 0.0, %v625
          %v627 = vpop.f32.mrf.mxu0
          %v628 = vadd.f32 0.0, %v627
          %629 = vdwg.mxu0
          %630 = vmatpush.bf16.msra.mxu0 0
          %631 = vmatpush.bf16.msra.mxu0 0
          %632 = vmatpush.bf16.msra.mxu0 0
          %633 = vmatpush.bf16.msra.mxu0 0
          %634 = vmatpush.bf16.msra.mxu0 0
          %635 = vmatpush.bf16.msra.mxu0 0
          %636 = vmatpush.bf16.msra.mxu0 %v579
          %637 = vmatpush.bf16.msra.mxu0 %v576
          %638 = vmatmul.bf16.gmra.mxu0 %v587
          %v639 = vpop.f32.mrf.mxu0
          %v640 = vadd.f32 0.0, %v639
          %v641 = vpop.f32.mrf.mxu0
          %v642 = vadd.f32 0.0, %v641
          %643 = vmatmul.bf16.gmra.mxu0 %v590
          %v644 = vpop.f32.mrf.mxu0
          %v645 = vadd.f32 0.0, %v644
          %v646 = vpop.f32.mrf.mxu0
          %v647 = vadd.f32 0.0, %v646
          %648 = vdwg.mxu0
          %v649 = vadd.f32 %v492, %v602
          %v650 = vadd.f32 %v511, %v621
          %v651 = vadd.f32 %v530, %v640
          %v652 = vadd.f32 %v494, %v604
          %v653 = vadd.f32 %v513, %v623
          %v654 = vadd.f32 %v532, %v642
          %v655 = vadd.f32 %v497, %v607
          %v656 = vadd.f32 %v516, %v626
          %v657 = vadd.f32 %v535, %v645
          %v658 = vadd.f32 %v499, %v609
          %v659 = vadd.f32 %v518, %v628
          %v660 = vadd.f32 %v537, %v647
          %s661 = scalar_lea.vmem [#allocation5], 144
          %v662 = vld [vmem:[%s661] sm:$0xff]
          %v663 = vld [vmem:[%s661 + $0x8] sm:$0xf]
          %v664 = vld [vmem:[%s661 + $0xc] sm:$0xff]
          %v665 = vld [vmem:[%s661 + $0x14] sm:$0xf]
          %v666 = vld [vmem:[%s661 + $0x18] sm:$0xff]
          %v667 = vld [vmem:[%s661 + $0x20] sm:$0xf]
          %v668 = vld [vmem:[%s661 + $0x24] sm:$0xff]
          %v669 = vld [vmem:[%s661 + $0x2c] sm:$0xf]
          %vm670 = vsmask.f32 6400
          %v671 = vrot.slane %v336, 1
          %v672 = vrot.slane %v338, 2
          %v673 = vor.u32 %v671, %v672
          %v674 = vrot.slane %v347, 1
          %v675 = vrot.slane %v343, 2
          %v676 = vor.u32 %v674, %v675
          %v677 = vsel %vm670, %v673, %v676
          %v686 = vunpack.c.l.b16 %v662
          %v687 = vunpack.c.h.b16 %v662
          %v688 = vunpack.c.l.b16 %v663
          %v689 = vunpack.c.l.b16 %v664
          %v690 = vunpack.c.h.b16 %v664
          %v691 = vunpack.c.l.b16 %v665
          %v692 = vunpack.c.l.b16 %v666
          %v693 = vunpack.c.h.b16 %v666
          %v694 = vunpack.c.l.b16 %v667
          %v695 = vunpack.c.l.b16 %v668
          %v696 = vunpack.c.h.b16 %v668
          %v697 = vunpack.c.l.b16 %v669
          %v698 = vpack.c.b16 %v689, %v686
          %v699 = vpack.c.b16 %v690, %v687
          %v700 = vpack.c.b16 %v691, %v688
          %v701 = vpack.c.b16 %v695, %v692
          %v702 = vpack.c.b16 %v696, %v693
          %v703 = vpack.c.b16 %v697, %v694
          %v711 = vsel %vm382, %v677, 0
          %v714 = vsel %vm382, %v676, 0
          %716 = vmatpush.bf16.msra.mxu0 0
          %717 = vmatpush.bf16.msra.mxu0 0
          %718 = vmatpush.bf16.msra.mxu0 0
          %719 = vmatpush.bf16.msra.mxu0 0
          %720 = vmatpush.bf16.msra.mxu0 0
          %721 = vmatpush.bf16.msra.mxu0 0
          %722 = vmatpush.bf16.msra.mxu0 %v701
          %723 = vmatpush.bf16.msra.mxu0 %v698
          %724 = vmatmul.bf16.gmra.mxu0 %v711
          %v725 = vpop.f32.mrf.mxu0
          %v726 = vadd.f32 0.0, %v725
          %v727 = vpop.f32.mrf.mxu0
          %v728 = vadd.f32 0.0, %v727
          %729 = vmatmul.bf16.gmra.mxu0 %v714
          %v730 = vpop.f32.mrf.mxu0
          %v731 = vadd.f32 0.0, %v730
          %v732 = vpop.f32.mrf.mxu0
          %v733 = vadd.f32 0.0, %v732
          %734 = vdwg.mxu0
          %735 = vmatpush.bf16.msra.mxu0 0
          %736 = vmatpush.bf16.msra.mxu0 0
          %737 = vmatpush.bf16.msra.mxu0 0
          %738 = vmatpush.bf16.msra.mxu0 0
          %739 = vmatpush.bf16.msra.mxu0 0
          %740 = vmatpush.bf16.msra.mxu0 0
          %741 = vmatpush.bf16.msra.mxu0 %v702
          %742 = vmatpush.bf16.msra.mxu0 %v699
          %743 = vmatmul.bf16.gmra.mxu0 %v711
          %v744 = vpop.f32.mrf.mxu0
          %v745 = vadd.f32 0.0, %v744
          %v746 = vpop.f32.mrf.mxu0
          %v747 = vadd.f32 0.0, %v746
          %748 = vmatmul.bf16.gmra.mxu0 %v714
          %v749 = vpop.f32.mrf.mxu0
          %v750 = vadd.f32 0.0, %v749
          %v751 = vpop.f32.mrf.mxu0
          %v752 = vadd.f32 0.0, %v751
          %753 = vdwg.mxu0
          %754 = vmatpush.bf16.msra.mxu0 0
          %755 = vmatpush.bf16.msra.mxu0 0
          %756 = vmatpush.bf16.msra.mxu0 0
          %757 = vmatpush.bf16.msra.mxu0 0
          %758 = vmatpush.bf16.msra.mxu0 0
          %759 = vmatpush.bf16.msra.mxu0 0
          %760 = vmatpush.bf16.msra.mxu0 %v703
          %761 = vmatpush.bf16.msra.mxu0 %v700
          %762 = vmatmul.bf16.gmra.mxu0 %v711
          %v763 = vpop.f32.mrf.mxu0
          %v764 = vadd.f32 0.0, %v763
          %v765 = vpop.f32.mrf.mxu0
          %v766 = vadd.f32 0.0, %v765
          %767 = vmatmul.bf16.gmra.mxu0 %v714
          %v768 = vpop.f32.mrf.mxu0
          %v769 = vadd.f32 0.0, %v768
          %v770 = vpop.f32.mrf.mxu0
          %v771 = vadd.f32 0.0, %v770
          %772 = vdwg.mxu0
          %v773 = vadd.f32 %v649, %v726
          %v774 = vadd.f32 %v650, %v745
          %v775 = vadd.f32 %v651, %v764
          %v776 = vadd.f32 %v652, %v728
          %v777 = vadd.f32 %v653, %v747
          %v778 = vadd.f32 %v654, %v766
          %v779 = vadd.f32 %v655, %v731
          %v780 = vadd.f32 %v656, %v750
          %v781 = vadd.f32 %v657, %v769
          %v782 = vadd.f32 %v658, %v733
          %v783 = vadd.f32 %v659, %v752
          %v784 = vadd.f32 %v660, %v771
          %s785 = scalar_lea.vmem [#allocation5], 192
          %v786 = vld [vmem:[%s785] sm:$0xff]
          %v787 = vld [vmem:[%s785 + $0x8] sm:$0xf]
          %v788 = vld [vmem:[%s785 + $0xc] sm:$0xff]
          %v789 = vld [vmem:[%s785 + $0x14] sm:$0xf]
          %v790 = vld [vmem:[%s785 + $0x18] sm:$0xff]
          %v791 = vld [vmem:[%s785 + $0x20] sm:$0xf]
          %v792 = vld [vmem:[%s785 + $0x24] sm:$0xff]
          %v793 = vld [vmem:[%s785 + $0x2c] sm:$0xf]
          %vm794 = vcmask 1045504
          %v795 = vrot.slane %v315, 2
          %v796 = vrot.slane %v316, 2
          %v797 = vsel %vm794, %v795, %v796
          %v806 = vunpack.c.l.b16 %v786
          %v807 = vunpack.c.h.b16 %v786
          %v808 = vunpack.c.l.b16 %v787
          %v809 = vunpack.c.l.b16 %v788
          %v810 = vunpack.c.h.b16 %v788
          %v811 = vunpack.c.l.b16 %v789
          %v812 = vunpack.c.l.b16 %v790
          %v813 = vunpack.c.h.b16 %v790
          %v814 = vunpack.c.l.b16 %v791
          %v815 = vunpack.c.l.b16 %v792
          %v816 = vunpack.c.h.b16 %v792
          %v817 = vunpack.c.l.b16 %v793
          %v818 = vpack.c.b16 %v809, %v806
          %v819 = vpack.c.b16 %v810, %v807
          %v820 = vpack.c.b16 %v811, %v808
          %v821 = vpack.c.b16 %v815, %v812
          %v822 = vpack.c.b16 %v816, %v813
          %v823 = vpack.c.b16 %v817, %v814
          %v831 = vsel %vm382, %v797, 0
          %v834 = vsel %vm382, %v796, 0
          %836 = vmatpush.bf16.msra.mxu0 0
          %837 = vmatpush.bf16.msra.mxu0 0
          %838 = vmatpush.bf16.msra.mxu0 0
          %839 = vmatpush.bf16.msra.mxu0 0
          %840 = vmatpush.bf16.msra.mxu0 0
          %841 = vmatpush.bf16.msra.mxu0 0
          %842 = vmatpush.bf16.msra.mxu0 %v821
          %843 = vmatpush.bf16.msra.mxu0 %v818
          %844 = vmatmul.bf16.gmra.mxu0 %v831
          %v845 = vpop.f32.mrf.mxu0
          %v846 = vadd.f32 0.0, %v845
          %v847 = vpop.f32.mrf.mxu0
          %v848 = vadd.f32 0.0, %v847
          %849 = vmatmul.bf16.gmra.mxu0 %v834
          %v850 = vpop.f32.mrf.mxu0
          %v851 = vadd.f32 0.0, %v850
          %v852 = vpop.f32.mrf.mxu0
          %v853 = vadd.f32 0.0, %v852
          %854 = vdwg.mxu0
          %855 = vmatpush.bf16.msra.mxu0 0
          %856 = vmatpush.bf16.msra.mxu0 0
          %857 = vmatpush.bf16.msra.mxu0 0
          %858 = vmatpush.bf16.msra.mxu0 0
          %859 = vmatpush.bf16.msra.mxu0 0
          %860 = vmatpush.bf16.msra.mxu0 0
          %861 = vmatpush.bf16.msra.mxu0 %v822
          %862 = vmatpush.bf16.msra.mxu0 %v819
          %863 = vmatmul.bf16.gmra.mxu0 %v831
          %v864 = vpop.f32.mrf.mxu0
          %v865 = vadd.f32 0.0, %v864
          %v866 = vpop.f32.mrf.mxu0
          %v867 = vadd.f32 0.0, %v866
          %868 = vmatmul.bf16.gmra.mxu0 %v834
          %v869 = vpop.f32.mrf.mxu0
          %v870 = vadd.f32 0.0, %v869
          %v871 = vpop.f32.mrf.mxu0
          %v872 = vadd.f32 0.0, %v871
          %873 = vdwg.mxu0
          %874 = vmatpush.bf16.msra.mxu0 0
          %875 = vmatpush.bf16.msra.mxu0 0
          %876 = vmatpush.bf16.msra.mxu0 0
          %877 = vmatpush.bf16.msra.mxu0 0
          %878 = vmatpush.bf16.msra.mxu0 0
          %879 = vmatpush.bf16.msra.mxu0 0
          %880 = vmatpush.bf16.msra.mxu0 %v823
          %881 = vmatpush.bf16.msra.mxu0 %v820
          %882 = vmatmul.bf16.gmra.mxu0 %v831
          %v883 = vpop.f32.mrf.mxu0
          %v884 = vadd.f32 0.0, %v883
          %v885 = vpop.f32.mrf.mxu0
          %v886 = vadd.f32 0.0, %v885
          %887 = vmatmul.bf16.gmra.mxu0 %v834
          %v888 = vpop.f32.mrf.mxu0
          %v889 = vadd.f32 0.0, %v888
          %v890 = vpop.f32.mrf.mxu0
          %v891 = vadd.f32 0.0, %v890
          %892 = vdwg.mxu0
          %v893 = vadd.f32 %v773, %v846
          %v894 = vadd.f32 %v774, %v865
          %v895 = vadd.f32 %v775, %v884
          %v896 = vadd.f32 %v776, %v848
          %v897 = vadd.f32 %v777, %v867
          %v898 = vadd.f32 %v778, %v886
          %v899 = vadd.f32 %v779, %v851
          %v900 = vadd.f32 %v780, %v870
          %v901 = vadd.f32 %v781, %v889
          %v902 = vadd.f32 %v782, %v853
          %v903 = vadd.f32 %v783, %v872
          %v904 = vadd.f32 %v784, %v891
          %v906 = vperm.slane %v296, 0
          %v907 = vperm.slane %v296, 1
          %v908 = vperm.slane %v296, 2
          %v912 = vadd.f32 %v893, %v906
          %v913 = vadd.f32 %v894, %v907
          %v914 = vadd.f32 %v895, %v908
          %v915 = vadd.f32 %v896, %v906
          %v916 = vadd.f32 %v897, %v907
          %v917 = vadd.f32 %v898, %v908
          %v918 = vadd.f32 %v899, %v906
          %v919 = vadd.f32 %v900, %v907
          %v920 = vadd.f32 %v901, %v908
          %v921 = vadd.f32 %v902, %v906
          %v922 = vadd.f32 %v903, %v907
          %v923 = vadd.f32 %v904, %v908
          %v924 = vmax.f32 %v912, 0.0
          %v925 = vmax.f32 %v913, 0.0
          %v926 = vmax.f32 %v914, 0.0
          %v927 = vmax.f32 %v915, 0.0
          %v928 = vmax.f32 %v916, 0.0
          %v929 = vmax.f32 %v917, 0.0
          %v930 = vmax.f32 %v918, 0.0
          %v931 = vmax.f32 %v919, 0.0
          %v932 = vmax.f32 %v920, 0.0
          %v933 = vmax.f32 %v921, 0.0
          %v934 = vmax.f32 %v922, 0.0
          %v935 = vmax.f32 %v923, 0.0
          %948 = vrot.lane.b32.xlu0 %v924, 127
          %v949 = vpop.permute.xlu0 %948
          %950 = vrot.lane.b32.xlu0 %v925, 127
          %v951 = vpop.permute.xlu0 %950
          %952 = vrot.lane.b32.xlu0 %v926, 127
          %v953 = vpop.permute.xlu0 %952
          %954 = vrot.lane.b32.xlu0 %v927, 127
          %v955 = vpop.permute.xlu0 %954
          %956 = vrot.lane.b32.xlu0 %v928, 127
          %v957 = vpop.permute.xlu0 %956
          %958 = vrot.lane.b32.xlu0 %v929, 127
          %v959 = vpop.permute.xlu0 %958
          %960 = vrot.lane.b32.xlu0 %v930, 127
          %v961 = vpop.permute.xlu0 %960
          %962 = vrot.lane.b32.xlu0 %v931, 127
          %v963 = vpop.permute.xlu0 %962
          %964 = vrot.lane.b32.xlu0 %v932, 127
          %v965 = vpop.permute.xlu0 %964
          %966 = vrot.lane.b32.xlu0 %v933, 127
          %v967 = vpop.permute.xlu0 %966
          %968 = vrot.lane.b32.xlu0 %v934, 127
          %v969 = vpop.permute.xlu0 %968
          %970 = vrot.lane.b32.xlu0 %v935, 127
          %v971 = vpop.permute.xlu0 %970
          %vm972 = vcmask 1039360
          %v973 = vsel %vm972, %v949, %v951
          %v974 = vsel %vm972, %v951, %v953
          %v975 = vsel %vm972, %v955, %v957
          %v976 = vsel %vm972, %v957, %v959
          %v977 = vsel %vm972, %v961, %v963
          %v978 = vsel %vm972, %v963, %v965
          %v979 = vsel %vm972, %v967, %v969
          %v980 = vsel %vm972, %v969, %v971
          %v993 = vmax.f32 %v924, %v973
          %v994 = vmax.f32 %v925, %v974
          %v995 = vmax.f32 %v926, %v953
          %v996 = vmax.f32 %v927, %v975
          %v997 = vmax.f32 %v928, %v976
          %v998 = vmax.f32 %v929, %v959
          %v999 = vmax.f32 %v930, %v977
          %v1000 = vmax.f32 %v931, %v978
          %v1001 = vmax.f32 %v932, %v965
          %v1002 = vmax.f32 %v933, %v979
          %v1003 = vmax.f32 %v934, %v980
          %v1004 = vmax.f32 %v935, %v971
          %1005 = vrot.lane.b32.xlu0 %v924, 126
          %v1006 = vpop.permute.xlu0 %1005
          %1007 = vrot.lane.b32.xlu0 %v925, 126
          %v1008 = vpop.permute.xlu0 %1007
          %1009 = vrot.lane.b32.xlu0 %v926, 126
          %v1010 = vpop.permute.xlu0 %1009
          %1011 = vrot.lane.b32.xlu0 %v927, 126
          %v1012 = vpop.permute.xlu0 %1011
          %1013 = vrot.lane.b32.xlu0 %v928, 126
          %v1014 = vpop.permute.xlu0 %1013
          %1015 = vrot.lane.b32.xlu0 %v929, 126
          %v1016 = vpop.permute.xlu0 %1015
          %1017 = vrot.lane.b32.xlu0 %v930, 126
          %v1018 = vpop.permute.xlu0 %1017
          %1019 = vrot.lane.b32.xlu0 %v931, 126
          %v1020 = vpop.permute.xlu0 %1019
          %1021 = vrot.lane.b32.xlu0 %v932, 126
          %v1022 = vpop.permute.xlu0 %1021
          %1023 = vrot.lane.b32.xlu0 %v933, 126
          %v1024 = vpop.permute.xlu0 %1023
          %1025 = vrot.lane.b32.xlu0 %v934, 126
          %v1026 = vpop.permute.xlu0 %1025
          %1027 = vrot.lane.b32.xlu0 %v935, 126
          %v1028 = vpop.permute.xlu0 %1027
          %vm1029 = vcmask 1031168
          %v1030 = vsel %vm1029, %v1006, %v1008
          %v1031 = vsel %vm1029, %v1008, %v1010
          %v1032 = vsel %vm1029, %v1012, %v1014
          %v1033 = vsel %vm1029, %v1014, %v1016
          %v1034 = vsel %vm1029, %v1018, %v1020
          %v1035 = vsel %vm1029, %v1020, %v1022
          %v1036 = vsel %vm1029, %v1024, %v1026
          %v1037 = vsel %vm1029, %v1026, %v1028
          %v1050 = vmax.f32 %v993, %v1030
          %v1051 = vmax.f32 %v994, %v1031
          %v1052 = vmax.f32 %v995, %v1010
          %v1053 = vmax.f32 %v996, %v1032
          %v1054 = vmax.f32 %v997, %v1033
          %v1055 = vmax.f32 %v998, %v1016
          %v1056 = vmax.f32 %v999, %v1034
          %v1057 = vmax.f32 %v1000, %v1035
          %v1058 = vmax.f32 %v1001, %v1022
          %v1059 = vmax.f32 %v1002, %v1036
          %v1060 = vmax.f32 %v1003, %v1037
          %v1061 = vmax.f32 %v1004, %v1028
          %vm1074 = vcmask 1046528
          %v1075 = vrot.slane %v1050, 1
          %v1076 = vrot.slane %v1053, 1
          %v1077 = vsel %vm1074, %v1075, %v1076
          %v1078 = vrot.slane %v1051, 1
          %v1079 = vrot.slane %v1054, 1
          %v1080 = vsel %vm1074, %v1078, %v1079
          %v1081 = vrot.slane %v1052, 1
          %v1082 = vrot.slane %v1055, 1
          %v1083 = vsel %vm1074, %v1081, %v1082
          %v1084 = vrot.slane %v1056, 1
          %v1085 = vsel %vm1074, %v1076, %v1084
          %v1086 = vrot.slane %v1057, 1
          %v1087 = vsel %vm1074, %v1079, %v1086
          %v1088 = vrot.slane %v1058, 1
          %v1089 = vsel %vm1074, %v1082, %v1088
          %v1090 = vrot.slane %v1059, 1
          %v1091 = vsel %vm1074, %v1084, %v1090
          %v1092 = vrot.slane %v1060, 1
          %v1093 = vsel %vm1074, %v1086, %v1092
          %v1094 = vrot.slane %v1061, 1
          %v1095 = vsel %vm1074, %v1088, %v1094
          %v1108 = vmax.f32 %v1050, %v1077
          %v1109 = vmax.f32 %v1051, %v1080
          %v1110 = vmax.f32 %v1052, %v1083
          %v1111 = vmax.f32 %v1053, %v1085
          %v1112 = vmax.f32 %v1054, %v1087
          %v1113 = vmax.f32 %v1055, %v1089
          %v1114 = vmax.f32 %v1056, %v1091
          %v1115 = vmax.f32 %v1057, %v1093
          %v1116 = vmax.f32 %v1058, %v1095
          %v1117 = vmax.f32 %v1059, %v1090
          %v1118 = vmax.f32 %v1060, %v1092
          %v1119 = vmax.f32 %v1061, %v1094
          %vm1120 = vcmask 1045504
          %v1121 = vrot.slane %v1050, 2
          %v1122 = vrot.slane %v1053, 2
          %v1123 = vsel %vm1120, %v1121, %v1122
          %v1124 = vrot.slane %v1051, 2
          %v1125 = vrot.slane %v1054, 2
          %v1126 = vsel %vm1120, %v1124, %v1125
          %v1127 = vrot.slane %v1052, 2
          %v1128 = vrot.slane %v1055, 2
          %v1129 = vsel %vm1120, %v1127, %v1128
          %v1130 = vrot.slane %v1056, 2
          %v1131 = vsel %vm1120, %v1122, %v1130
          %v1132 = vrot.slane %v1057, 2
          %v1133 = vsel %vm1120, %v1125, %v1132
          %v1134 = vrot.slane %v1058, 2
          %v1135 = vsel %vm1120, %v1128, %v1134
          %v1136 = vrot.slane %v1059, 2
          %v1137 = vsel %vm1120, %v1130, %v1136
          %v1138 = vrot.slane %v1060, 2
          %v1139 = vsel %vm1120, %v1132, %v1138
          %v1140 = vrot.slane %v1061, 2
          %v1141 = vsel %vm1120, %v1134, %v1140
          %v1154 = vmax.f32 %v1108, %v1123
          %v1155 = vmax.f32 %v1109, %v1126
          %v1156 = vmax.f32 %v1110, %v1129
          %v1157 = vmax.f32 %v1111, %v1131
          %v1158 = vmax.f32 %v1112, %v1133
          %v1159 = vmax.f32 %v1113, %v1135
          %v1160 = vmax.f32 %v1114, %v1137
          %v1161 = vmax.f32 %v1115, %v1139
          %v1162 = vmax.f32 %v1116, %v1141
          %v1163 = vmax.f32 %v1117, %v1136
          %v1164 = vmax.f32 %v1118, %v1138
          %v1165 = vmax.f32 %v1119, %v1140
          %v1166 = vld [vmem:[#allocation8] sm:$0xff]
          %v1167 = vld [vmem:[#allocation8 + $0x8] sm:$0xff]
          %v1168 = vld [vmem:[#allocation8 + $0x10] sm:$0xff]
          %v1169 = vld [vmem:[#allocation8 + $0x18] sm:$0xff]
          %v1170 = vld [vmem:[#allocation8 + $0x20] sm:$0xff]
          %v1171 = vld [vmem:[#allocation8 + $0x28] sm:$0xff]
          %v1172 = vld [vmem:[#allocation8 + $0x30] sm:$0xff]
          %v1173 = vld [vmem:[#allocation8 + $0x38] sm:$0xff]
          %v1174 = vld [vmem:[#allocation8 + $0x40] sm:$0xff]
          %v1175 = vld [vmem:[#allocation8 + $0x48] sm:$0x3]
          %v1176 = vld [vmem:[#allocation8 + $0x50] sm:$0x3]
          %v1177 = vld [vmem:[#allocation8 + $0x58] sm:$0x3]
          %v1178 = vmul.f32 %v1154, %v1166
          %v1179 = vmul.f32 %v1155, %v1167
          %v1180 = vmul.f32 %v1156, %v1168
          %v1181 = vmul.f32 %v1157, %v1169
          %v1182 = vmul.f32 %v1158, %v1170
          %v1183 = vmul.f32 %v1159, %v1171
          %v1184 = vmul.f32 %v1160, %v1172
          %v1185 = vmul.f32 %v1161, %v1173
          %v1186 = vmul.f32 %v1162, %v1174
          %v1187 = vmul.f32 %v1163, %v1175
          %v1188 = vmul.f32 %v1164, %v1176
          %v1189 = vmul.f32 %v1165, %v1177
          %v1190 = vadd.f32 %v1178, %v1179
          %vm1191 = vcmask 179200
          %v1192 = vsel %vm1191, %v1180, 0.0
          %v1193 = vadd.f32 %v1190, %v1192
          %v1194 = vadd.f32 %v1193, %v1181
          %v1195 = vadd.f32 %v1194, %v1182
          %v1196 = vsel %vm1191, %v1183, 0.0
          %v1197 = vadd.f32 %v1195, %v1196
          %v1198 = vadd.f32 %v1197, %v1184
          %v1199 = vadd.f32 %v1198, %v1185
          %v1200 = vsel %vm1191, %v1186, 0.0
          %v1201 = vadd.f32 %v1199, %v1200
          %vm1202 = vcmask 1041408
          %v1203 = vsel %vm1202, %v1187, 0.0
          %v1204 = vadd.f32 %v1201, %v1203
          %v1205 = vsel %vm1202, %v1188, 0.0
          %v1206 = vadd.f32 %v1204, %v1205
          %vm1207 = vcmask 173056
          %v1208 = vsel %vm1207, %v1189, 0.0
          %v1209 = vadd.f32 %v1206, %v1208
          %1210 = vadd.xlane.f32.xlu0 %v1209
          %v1211 = vpop.xlane.xlu0 %1210
          %v1212 = vrot.slane %v1211, 4
          %v1213 = vadd.f32 %v1211, %v1212
          %v1214 = vrot.slane %v1213, 2
          %v1215 = vadd.f32 %v1213, %v1214
          %v1216 = vrot.slane %v1215, 1
          %v1217 = vadd.f32 %v1215, %v1216
          %s1218 = vtos %v1217
          %vm1219 = vcmp.eq.s32.totalorder %v299, 0
          %v1220 = vstv %s1218
          %v1221 = vsel %vm1219, %v1220, 0.0
          %s1222 = scalar_lea.vmem [#allocation8], 96
          %v1223 = vld [vmem:[%s1222] sm:$0xff]
          %v1224 = vld [vmem:[%s1222 + $0x8] sm:$0xff]
          %v1225 = vld [vmem:[%s1222 + $0x10] sm:$0xff]
          %v1226 = vld [vmem:[%s1222 + $0x18] sm:$0xff]
          %v1227 = vld [vmem:[%s1222 + $0x20] sm:$0xff]
          %v1228 = vld [vmem:[%s1222 + $0x28] sm:$0xff]
          %v1229 = vld [vmem:[%s1222 + $0x30] sm:$0xff]
          %v1230 = vld [vmem:[%s1222 + $0x38] sm:$0xff]
          %v1231 = vld [vmem:[%s1222 + $0x40] sm:$0xff]
          %v1232 = vld [vmem:[%s1222 + $0x48] sm:$0x3]
          %v1233 = vld [vmem:[%s1222 + $0x50] sm:$0x3]
          %v1234 = vld [vmem:[%s1222 + $0x58] sm:$0x3]
          %v1235 = vmul.f32 %v1154, %v1223
          %v1236 = vmul.f32 %v1155, %v1224
          %v1237 = vmul.f32 %v1156, %v1225
          %v1238 = vmul.f32 %v1157, %v1226
          %v1239 = vmul.f32 %v1158, %v1227
          %v1240 = vmul.f32 %v1159, %v1228
          %v1241 = vmul.f32 %v1160, %v1229
          %v1242 = vmul.f32 %v1161, %v1230
          %v1243 = vmul.f32 %v1162, %v1231
          %v1244 = vmul.f32 %v1163, %v1232
          %v1245 = vmul.f32 %v1164, %v1233
          %v1246 = vmul.f32 %v1165, %v1234
          %v1247 = vadd.f32 %v1235, %v1236
          %v1248 = vsel %vm1191, %v1237, 0.0
          %v1249 = vadd.f32 %v1247, %v1248
          %v1250 = vadd.f32 %v1249, %v1238
          %v1251 = vadd.f32 %v1250, %v1239
          %v1252 = vsel %vm1191, %v1240, 0.0
          %v1253 = vadd.f32 %v1251, %v1252
          %v1254 = vadd.f32 %v1253, %v1241
          %v1255 = vadd.f32 %v1254, %v1242
          %v1256 = vsel %vm1191, %v1243, 0.0
          %v1257 = vadd.f32 %v1255, %v1256
          %v1258 = vsel %vm1202, %v1244, 0.0
          %v1259 = vadd.f32 %v1257, %v1258
          %v1260 = vsel %vm1202, %v1245, 0.0
          %v1261 = vadd.f32 %v1259, %v1260
          %v1262 = vsel %vm1207, %v1246, 0.0
          %v1263 = vadd.f32 %v1261, %v1262
          %1264 = vadd.xlane.f32.xlu0 %v1263
          %v1265 = vpop.xlane.xlu0 %1264
          %v1266 = vrot.slane %v1265, 4
          %v1267 = vadd.f32 %v1265, %v1266
          %v1268 = vrot.slane %v1267, 2
          %v1269 = vadd.f32 %v1267, %v1268
          %v1270 = vrot.slane %v1269, 1
          %v1271 = vadd.f32 %v1269, %v1270
          %s1272 = vtos %v1271
          %vm1273 = vcmp.eq.s32.totalorder %v299, 1
          %v1274 = vstv %s1272
          %v1275 = vsel %vm1273, %v1274, %v1221
          %s1276 = scalar_lea.vmem [#allocation8], 192
          %v1277 = vld [vmem:[%s1276] sm:$0xff]
          %v1278 = vld [vmem:[%s1276 + $0x8] sm:$0xff]
          %v1279 = vld [vmem:[%s1276 + $0x10] sm:$0xff]
          %v1280 = vld [vmem:[%s1276 + $0x18] sm:$0xff]
          %v1281 = vld [vmem:[%s1276 + $0x20] sm:$0xff]
          %v1282 = vld [vmem:[%s1276 + $0x28] sm:$0xff]
          %v1283 = vld [vmem:[%s1276 + $0x30] sm:$0xff]
          %v1284 = vld [vmem:[%s1276 + $0x38] sm:$0xff]
          %v1285 = vld [vmem:[%s1276 + $0x40] sm:$0xff]
          %v1286 = vld [vmem:[%s1276 + $0x48] sm:$0x3]
          %v1287 = vld [vmem:[%s1276 + $0x50] sm:$0x3]
          %v1288 = vld [vmem:[%s1276 + $0x58] sm:$0x3]
          %v1289 = vmul.f32 %v1154, %v1277
          %v1290 = vmul.f32 %v1155, %v1278
          %v1291 = vmul.f32 %v1156, %v1279
          %v1292 = vmul.f32 %v1157, %v1280
          %v1293 = vmul.f32 %v1158, %v1281
          %v1294 = vmul.f32 %v1159, %v1282
          %v1295 = vmul.f32 %v1160, %v1283
          %v1296 = vmul.f32 %v1161, %v1284
          %v1297 = vmul.f32 %v1162, %v1285
          %v1298 = vmul.f32 %v1163, %v1286
          %v1299 = vmul.f32 %v1164, %v1287
          %v1300 = vmul.f32 %v1165, %v1288
          %v1301 = vadd.f32 %v1289, %v1290
          %v1302 = vsel %vm1191, %v1291, 0.0
          %v1303 = vadd.f32 %v1301, %v1302
          %v1304 = vadd.f32 %v1303, %v1292
          %v1305 = vadd.f32 %v1304, %v1293
          %v1306 = vsel %vm1191, %v1294, 0.0
          %v1307 = vadd.f32 %v1305, %v1306
          %v1308 = vadd.f32 %v1307, %v1295
          %v1309 = vadd.f32 %v1308, %v1296
          %v1310 = vsel %vm1191, %v1297, 0.0
          %v1311 = vadd.f32 %v1309, %v1310
          %v1312 = vsel %vm1202, %v1298, 0.0
          %v1313 = vadd.f32 %v1311, %v1312
          %v1314 = vsel %vm1202, %v1299, 0.0
          %v1315 = vadd.f32 %v1313, %v1314
          %v1316 = vsel %vm1207, %v1300, 0.0
          %v1317 = vadd.f32 %v1315, %v1316
          %1318 = vadd.xlane.f32.xlu0 %v1317
          %v1319 = vpop.xlane.xlu0 %1318
          %v1320 = vrot.slane %v1319, 4
          %v1321 = vadd.f32 %v1319, %v1320
          %v1322 = vrot.slane %v1321, 2
          %v1323 = vadd.f32 %v1321, %v1322
          %v1324 = vrot.slane %v1323, 1
          %v1325 = vadd.f32 %v1323, %v1324
          %s1326 = vtos %v1325
          %vm1327 = vcmp.eq.s32.totalorder %v299, 2
          %v1328 = vstv %s1326
          %v1329 = vsel %vm1327, %v1328, %v1275
          %s1330 = scalar_lea.vmem [#allocation8], 288
          %v1331 = vld [vmem:[%s1330] sm:$0xff]
          %v1332 = vld [vmem:[%s1330 + $0x8] sm:$0xff]
          %v1333 = vld [vmem:[%s1330 + $0x10] sm:$0xff]
          %v1334 = vld [vmem:[%s1330 + $0x18] sm:$0xff]
          %v1335 = vld [vmem:[%s1330 + $0x20] sm:$0xff]
          %v1336 = vld [vmem:[%s1330 + $0x28] sm:$0xff]
          %v1337 = vld [vmem:[%s1330 + $0x30] sm:$0xff]
          %v1338 = vld [vmem:[%s1330 + $0x38] sm:$0xff]
          %v1339 = vld [vmem:[%s1330 + $0x40] sm:$0xff]
          %v1340 = vld [vmem:[%s1330 + $0x48] sm:$0x3]
          %v1341 = vld [vmem:[%s1330 + $0x50] sm:$0x3]
          %v1342 = vld [vmem:[%s1330 + $0x58] sm:$0x3]
          %v1343 = vmul.f32 %v1154, %v1331
          %v1344 = vmul.f32 %v1155, %v1332
          %v1345 = vmul.f32 %v1156, %v1333
          %v1346 = vmul.f32 %v1157, %v1334
          %v1347 = vmul.f32 %v1158, %v1335
          %v1348 = vmul.f32 %v1159, %v1336
          %v1349 = vmul.f32 %v1160, %v1337
          %v1350 = vmul.f32 %v1161, %v1338
          %v1351 = vmul.f32 %v1162, %v1339
          %v1352 = vmul.f32 %v1163, %v1340
          %v1353 = vmul.f32 %v1164, %v1341
          %v1354 = vmul.f32 %v1165, %v1342
          %v1355 = vadd.f32 %v1343, %v1344
          %v1356 = vsel %vm1191, %v1345, 0.0
          %v1357 = vadd.f32 %v1355, %v1356
          %v1358 = vadd.f32 %v1357, %v1346
          %v1359 = vadd.f32 %v1358, %v1347
          %v1360 = vsel %vm1191, %v1348, 0.0
          %v1361 = vadd.f32 %v1359, %v1360
          %v1362 = vadd.f32 %v1361, %v1349
          %v1363 = vadd.f32 %v1362, %v1350
          %v1364 = vsel %vm1191, %v1351, 0.0
          %v1365 = vadd.f32 %v1363, %v1364
          %v1366 = vsel %vm1202, %v1352, 0.0
          %v1367 = vadd.f32 %v1365, %v1366
          %v1368 = vsel %vm1202, %v1353, 0.0
          %v1369 = vadd.f32 %v1367, %v1368
          %v1370 = vsel %vm1207, %v1354, 0.0
          %v1371 = vadd.f32 %v1369, %v1370
          %1372 = vadd.xlane.f32.xlu0 %v1371
          %v1373 = vpop.xlane.xlu0 %1372
          %v1374 = vrot.slane %v1373, 4
          %v1375 = vadd.f32 %v1373, %v1374
          %v1376 = vrot.slane %v1375, 2
          %v1377 = vadd.f32 %v1375, %v1376
          %v1378 = vrot.slane %v1377, 1
          %v1379 = vadd.f32 %v1377, %v1378
          %s1380 = vtos %v1379
          %vm1381 = vcmp.eq.s32.totalorder %v299, 3
          %v1382 = vstv %s1380
          %v1383 = vsel %vm1381, %v1382, %v1329
          %s1384 = scalar_lea.vmem [#allocation8], 384
          %v1385 = vld [vmem:[%s1384] sm:$0xff]
          %v1386 = vld [vmem:[%s1384 + $0x8] sm:$0xff]
          %v1387 = vld [vmem:[%s1384 + $0x10] sm:$0xff]
          %v1388 = vld [vmem:[%s1384 + $0x18] sm:$0xff]
          %v1389 = vld [vmem:[%s1384 + $0x20] sm:$0xff]
          %v1390 = vld [vmem:[%s1384 + $0x28] sm:$0xff]
          %v1391 = vld [vmem:[%s1384 + $0x30] sm:$0xff]
          %v1392 = vld [vmem:[%s1384 + $0x38] sm:$0xff]
          %v1393 = vld [vmem:[%s1384 + $0x40] sm:$0xff]
          %v1394 = vld [vmem:[%s1384 + $0x48] sm:$0x3]
          %v1395 = vld [vmem:[%s1384 + $0x50] sm:$0x3]
          %v1396 = vld [vmem:[%s1384 + $0x58] sm:$0x3]
          %v1397 = vmul.f32 %v1154, %v1385
          %v1398 = vmul.f32 %v1155, %v1386
          %v1399 = vmul.f32 %v1156, %v1387
          %v1400 = vmul.f32 %v1157, %v1388
          %v1401 = vmul.f32 %v1158, %v1389
          %v1402 = vmul.f32 %v1159, %v1390
          %v1403 = vmul.f32 %v1160, %v1391
          %v1404 = vmul.f32 %v1161, %v1392
          %v1405 = vmul.f32 %v1162, %v1393
          %v1406 = vmul.f32 %v1163, %v1394
          %v1407 = vmul.f32 %v1164, %v1395
          %v1408 = vmul.f32 %v1165, %v1396
          %v1409 = vadd.f32 %v1397, %v1398
          %v1410 = vsel %vm1191, %v1399, 0.0
          %v1411 = vadd.f32 %v1409, %v1410
          %v1412 = vadd.f32 %v1411, %v1400
          %v1413 = vadd.f32 %v1412, %v1401
          %v1414 = vsel %vm1191, %v1402, 0.0
          %v1415 = vadd.f32 %v1413, %v1414
          %v1416 = vadd.f32 %v1415, %v1403
          %v1417 = vadd.f32 %v1416, %v1404
          %v1418 = vsel %vm1191, %v1405, 0.0
          %v1419 = vadd.f32 %v1417, %v1418
          %v1420 = vsel %vm1202, %v1406, 0.0
          %v1421 = vadd.f32 %v1419, %v1420
          %v1422 = vsel %vm1202, %v1407, 0.0
          %v1423 = vadd.f32 %v1421, %v1422
          %v1424 = vsel %vm1207, %v1408, 0.0
          %v1425 = vadd.f32 %v1423, %v1424
          %1426 = vadd.xlane.f32.xlu0 %v1425
          %v1427 = vpop.xlane.xlu0 %1426
          %v1428 = vrot.slane %v1427, 4
          %v1429 = vadd.f32 %v1427, %v1428
          %v1430 = vrot.slane %v1429, 2
          %v1431 = vadd.f32 %v1429, %v1430
          %v1432 = vrot.slane %v1431, 1
          %v1433 = vadd.f32 %v1431, %v1432
          %s1434 = vtos %v1433
          %vm1435 = vcmp.eq.s32.totalorder %v299, 4
          %v1436 = vstv %s1434
          %v1437 = vsel %vm1435, %v1436, %v1383
          %s1438 = scalar_lea.vmem [#allocation8], 480
          %v1439 = vld [vmem:[%s1438] sm:$0xff]
          %v1440 = vld [vmem:[%s1438 + $0x8] sm:$0xff]
          %v1441 = vld [vmem:[%s1438 + $0x10] sm:$0xff]
          %v1442 = vld [vmem:[%s1438 + $0x18] sm:$0xff]
          %v1443 = vld [vmem:[%s1438 + $0x20] sm:$0xff]
          %v1444 = vld [vmem:[%s1438 + $0x28] sm:$0xff]
          %v1445 = vld [vmem:[%s1438 + $0x30] sm:$0xff]
          %v1446 = vld [vmem:[%s1438 + $0x38] sm:$0xff]
          %v1447 = vld [vmem:[%s1438 + $0x40] sm:$0xff]
          %v1448 = vld [vmem:[%s1438 + $0x48] sm:$0x3]
          %v1449 = vld [vmem:[%s1438 + $0x50] sm:$0x3]
          %v1450 = vld [vmem:[%s1438 + $0x58] sm:$0x3]
          %v1451 = vmul.f32 %v1154, %v1439
          %v1452 = vmul.f32 %v1155, %v1440
          %v1453 = vmul.f32 %v1156, %v1441
          %v1454 = vmul.f32 %v1157, %v1442
          %v1455 = vmul.f32 %v1158, %v1443
          %v1456 = vmul.f32 %v1159, %v1444
          %v1457 = vmul.f32 %v1160, %v1445
          %v1458 = vmul.f32 %v1161, %v1446
          %v1459 = vmul.f32 %v1162, %v1447
          %v1460 = vmul.f32 %v1163, %v1448
          %v1461 = vmul.f32 %v1164, %v1449
          %v1462 = vmul.f32 %v1165, %v1450
          %v1463 = vadd.f32 %v1451, %v1452
          %v1464 = vsel %vm1191, %v1453, 0.0
          %v1465 = vadd.f32 %v1463, %v1464
          %v1466 = vadd.f32 %v1465, %v1454
          %v1467 = vadd.f32 %v1466, %v1455
          %v1468 = vsel %vm1191, %v1456, 0.0
          %v1469 = vadd.f32 %v1467, %v1468
          %v1470 = vadd.f32 %v1469, %v1457
          %v1471 = vadd.f32 %v1470, %v1458
          %v1472 = vsel %vm1191, %v1459, 0.0
          %v1473 = vadd.f32 %v1471, %v1472
          %v1474 = vsel %vm1202, %v1460, 0.0
          %v1475 = vadd.f32 %v1473, %v1474
          %v1476 = vsel %vm1202, %v1461, 0.0
          %v1477 = vadd.f32 %v1475, %v1476
          %v1478 = vsel %vm1207, %v1462, 0.0
          %v1479 = vadd.f32 %v1477, %v1478
          %1480 = vadd.xlane.f32.xlu0 %v1479
          %v1481 = vpop.xlane.xlu0 %1480
          %v1482 = vrot.slane %v1481, 4
          %v1483 = vadd.f32 %v1481, %v1482
          %v1484 = vrot.slane %v1483, 2
          %v1485 = vadd.f32 %v1483, %v1484
          %v1486 = vrot.slane %v1485, 1
          %v1487 = vadd.f32 %v1485, %v1486
          %s1488 = vtos %v1487
          %vm1489 = vcmp.eq.s32.totalorder %v299, 5
          %v1490 = vstv %s1488
          %v1491 = vsel %vm1489, %v1490, %v1437
          %s1492 = scalar_lea.vmem [#allocation8], 576
          %v1493 = vld [vmem:[%s1492] sm:$0xff]
          %v1494 = vld [vmem:[%s1492 + $0x8] sm:$0xff]
          %v1495 = vld [vmem:[%s1492 + $0x10] sm:$0xff]
          %v1496 = vld [vmem:[%s1492 + $0x18] sm:$0xff]
          %v1497 = vld [vmem:[%s1492 + $0x20] sm:$0xff]
          %v1498 = vld [vmem:[%s1492 + $0x28] sm:$0xff]
          %v1499 = vld [vmem:[%s1492 + $0x30] sm:$0xff]
          %v1500 = vld [vmem:[%s1492 + $0x38] sm:$0xff]
          %v1501 = vld [vmem:[%s1492 + $0x40] sm:$0xff]
          %v1502 = vld [vmem:[%s1492 + $0x48] sm:$0x3]
          %v1503 = vld [vmem:[%s1492 + $0x50] sm:$0x3]
          %v1504 = vld [vmem:[%s1492 + $0x58] sm:$0x3]
          %v1505 = vmul.f32 %v1154, %v1493
          %v1506 = vmul.f32 %v1155, %v1494
          %v1507 = vmul.f32 %v1156, %v1495
          %v1508 = vmul.f32 %v1157, %v1496
          %v1509 = vmul.f32 %v1158, %v1497
          %v1510 = vmul.f32 %v1159, %v1498
          %v1511 = vmul.f32 %v1160, %v1499
          %v1512 = vmul.f32 %v1161, %v1500
          %v1513 = vmul.f32 %v1162, %v1501
          %v1514 = vmul.f32 %v1163, %v1502
          %v1515 = vmul.f32 %v1164, %v1503
          %v1516 = vmul.f32 %v1165, %v1504
          %v1517 = vadd.f32 %v1505, %v1506
          %v1518 = vsel %vm1191, %v1507, 0.0
          %v1519 = vadd.f32 %v1517, %v1518
          %v1520 = vadd.f32 %v1519, %v1508
          %v1521 = vadd.f32 %v1520, %v1509
          %v1522 = vsel %vm1191, %v1510, 0.0
          %v1523 = vadd.f32 %v1521, %v1522
          %v1524 = vadd.f32 %v1523, %v1511
          %v1525 = vadd.f32 %v1524, %v1512
          %v1526 = vsel %vm1191, %v1513, 0.0
          %v1527 = vadd.f32 %v1525, %v1526
          %v1528 = vsel %vm1202, %v1514, 0.0
          %v1529 = vadd.f32 %v1527, %v1528
          %v1530 = vsel %vm1202, %v1515, 0.0
          %v1531 = vadd.f32 %v1529, %v1530
          %v1532 = vsel %vm1207, %v1516, 0.0
          %v1533 = vadd.f32 %v1531, %v1532
          %1534 = vadd.xlane.f32.xlu0 %v1533
          %v1535 = vpop.xlane.xlu0 %1534
          %v1536 = vrot.slane %v1535, 4
          %v1537 = vadd.f32 %v1535, %v1536
          %v1538 = vrot.slane %v1537, 2
          %v1539 = vadd.f32 %v1537, %v1538
          %v1540 = vrot.slane %v1539, 1
          %v1541 = vadd.f32 %v1539, %v1540
          %s1542 = vtos %v1541
          %vm1543 = vcmp.eq.s32.totalorder %v299, 6
          %v1544 = vstv %s1542
          %v1545 = vsel %vm1543, %v1544, %v1491
          %s1546 = scalar_lea.vmem [#allocation8], 672
          %v1547 = vld [vmem:[%s1546] sm:$0xff]
          %v1548 = vld [vmem:[%s1546 + $0x8] sm:$0xff]
          %v1549 = vld [vmem:[%s1546 + $0x10] sm:$0xff]
          %v1550 = vld [vmem:[%s1546 + $0x18] sm:$0xff]
          %v1551 = vld [vmem:[%s1546 + $0x20] sm:$0xff]
          %v1552 = vld [vmem:[%s1546 + $0x28] sm:$0xff]
          %v1553 = vld [vmem:[%s1546 + $0x30] sm:$0xff]
          %v1554 = vld [vmem:[%s1546 + $0x38] sm:$0xff]
          %v1555 = vld [vmem:[%s1546 + $0x40] sm:$0xff]
          %v1556 = vld [vmem:[%s1546 + $0x48] sm:$0x3]
          %v1557 = vld [vmem:[%s1546 + $0x50] sm:$0x3]
          %v1558 = vld [vmem:[%s1546 + $0x58] sm:$0x3]
          %v1559 = vmul.f32 %v1154, %v1547
          %v1560 = vmul.f32 %v1155, %v1548
          %v1561 = vmul.f32 %v1156, %v1549
          %v1562 = vmul.f32 %v1157, %v1550
          %v1563 = vmul.f32 %v1158, %v1551
          %v1564 = vmul.f32 %v1159, %v1552
          %v1565 = vmul.f32 %v1160, %v1553
          %v1566 = vmul.f32 %v1161, %v1554
          %v1567 = vmul.f32 %v1162, %v1555
          %v1568 = vmul.f32 %v1163, %v1556
          %v1569 = vmul.f32 %v1164, %v1557
          %v1570 = vmul.f32 %v1165, %v1558
          %v1571 = vadd.f32 %v1559, %v1560
          %v1572 = vsel %vm1191, %v1561, 0.0
          %v1573 = vadd.f32 %v1571, %v1572
          %v1574 = vadd.f32 %v1573, %v1562
          %v1575 = vadd.f32 %v1574, %v1563
          %v1576 = vsel %vm1191, %v1564, 0.0
          %v1577 = vadd.f32 %v1575, %v1576
          %v1578 = vadd.f32 %v1577, %v1565
          %v1579 = vadd.f32 %v1578, %v1566
          %v1580 = vsel %vm1191, %v1567, 0.0
          %v1581 = vadd.f32 %v1579, %v1580
          %v1582 = vsel %vm1202, %v1568, 0.0
          %v1583 = vadd.f32 %v1581, %v1582
          %v1584 = vsel %vm1202, %v1569, 0.0
          %v1585 = vadd.f32 %v1583, %v1584
          %v1586 = vsel %vm1207, %v1570, 0.0
          %v1587 = vadd.f32 %v1585, %v1586
          %1588 = vadd.xlane.f32.xlu0 %v1587
          %v1589 = vpop.xlane.xlu0 %1588
          %v1590 = vrot.slane %v1589, 4
          %v1591 = vadd.f32 %v1589, %v1590
          %v1592 = vrot.slane %v1591, 2
          %v1593 = vadd.f32 %v1591, %v1592
          %v1594 = vrot.slane %v1593, 1
          %v1595 = vadd.f32 %v1593, %v1594
          %s1596 = vtos %v1595
          %vm1597 = vcmp.eq.s32.totalorder %v299, 7
          %v1598 = vstv %s1596
          %v1599 = vsel %vm1597, %v1598, %v1545
          %s1600 = scalar_lea.vmem [#allocation8], 768
          %v1601 = vld [vmem:[%s1600] sm:$0xff]
          %v1602 = vld [vmem:[%s1600 + $0x8] sm:$0xff]
          %v1603 = vld [vmem:[%s1600 + $0x10] sm:$0xff]
          %v1604 = vld [vmem:[%s1600 + $0x18] sm:$0xff]
          %v1605 = vld [vmem:[%s1600 + $0x20] sm:$0xff]
          %v1606 = vld [vmem:[%s1600 + $0x28] sm:$0xff]
          %v1607 = vld [vmem:[%s1600 + $0x30] sm:$0xff]
          %v1608 = vld [vmem:[%s1600 + $0x38] sm:$0xff]
          %v1609 = vld [vmem:[%s1600 + $0x40] sm:$0xff]
          %v1610 = vld [vmem:[%s1600 + $0x48] sm:$0x3]
          %v1611 = vld [vmem:[%s1600 + $0x50] sm:$0x3]
          %v1612 = vld [vmem:[%s1600 + $0x58] sm:$0x3]
          %v1613 = vmul.f32 %v1154, %v1601
          %v1614 = vmul.f32 %v1155, %v1602
          %v1615 = vmul.f32 %v1156, %v1603
          %v1616 = vmul.f32 %v1157, %v1604
          %v1617 = vmul.f32 %v1158, %v1605
          %v1618 = vmul.f32 %v1159, %v1606
          %v1619 = vmul.f32 %v1160, %v1607
          %v1620 = vmul.f32 %v1161, %v1608
          %v1621 = vmul.f32 %v1162, %v1609
          %v1622 = vmul.f32 %v1163, %v1610
          %v1623 = vmul.f32 %v1164, %v1611
          %v1624 = vmul.f32 %v1165, %v1612
          %v1625 = vadd.f32 %v1613, %v1614
          %v1626 = vsel %vm1191, %v1615, 0.0
          %v1627 = vadd.f32 %v1625, %v1626
          %v1628 = vadd.f32 %v1627, %v1616
          %v1629 = vadd.f32 %v1628, %v1617
          %v1630 = vsel %vm1191, %v1618, 0.0
          %v1631 = vadd.f32 %v1629, %v1630
          %v1632 = vadd.f32 %v1631, %v1619
          %v1633 = vadd.f32 %v1632, %v1620
          %v1634 = vsel %vm1191, %v1621, 0.0
          %v1635 = vadd.f32 %v1633, %v1634
          %v1636 = vsel %vm1202, %v1622, 0.0
          %v1637 = vadd.f32 %v1635, %v1636
          %v1638 = vsel %vm1202, %v1623, 0.0
          %v1639 = vadd.f32 %v1637, %v1638
          %v1640 = vsel %vm1207, %v1624, 0.0
          %v1641 = vadd.f32 %v1639, %v1640
          %1642 = vadd.xlane.f32.xlu0 %v1641
          %v1643 = vpop.xlane.xlu0 %1642
          %v1644 = vrot.slane %v1643, 4
          %v1645 = vadd.f32 %v1643, %v1644
          %v1646 = vrot.slane %v1645, 2
          %v1647 = vadd.f32 %v1645, %v1646
          %v1648 = vrot.slane %v1647, 1
          %v1649 = vadd.f32 %v1647, %v1648
          %s1650 = vtos %v1649
          %vm1651 = vcmp.eq.s32.totalorder %v299, 8
          %v1652 = vstv %s1650
          %v1653 = vsel %vm1651, %v1652, %v1599
          %s1654 = scalar_lea.vmem [#allocation8], 864
          %v1655 = vld [vmem:[%s1654] sm:$0xff]
          %v1656 = vld [vmem:[%s1654 + $0x8] sm:$0xff]
          %v1657 = vld [vmem:[%s1654 + $0x10] sm:$0xff]
          %v1658 = vld [vmem:[%s1654 + $0x18] sm:$0xff]
          %v1659 = vld [vmem:[%s1654 + $0x20] sm:$0xff]
          %v1660 = vld [vmem:[%s1654 + $0x28] sm:$0xff]
          %v1661 = vld [vmem:[%s1654 + $0x30] sm:$0xff]
          %v1662 = vld [vmem:[%s1654 + $0x38] sm:$0xff]
          %v1663 = vld [vmem:[%s1654 + $0x40] sm:$0xff]
          %v1664 = vld [vmem:[%s1654 + $0x48] sm:$0x3]
          %v1665 = vld [vmem:[%s1654 + $0x50] sm:$0x3]
          %v1666 = vld [vmem:[%s1654 + $0x58] sm:$0x3]
          %v1667 = vmul.f32 %v1154, %v1655
          %v1668 = vmul.f32 %v1155, %v1656
          %v1669 = vmul.f32 %v1156, %v1657
          %v1670 = vmul.f32 %v1157, %v1658
          %v1671 = vmul.f32 %v1158, %v1659
          %v1672 = vmul.f32 %v1159, %v1660
          %v1673 = vmul.f32 %v1160, %v1661
          %v1674 = vmul.f32 %v1161, %v1662
          %v1675 = vmul.f32 %v1162, %v1663
          %v1676 = vmul.f32 %v1163, %v1664
          %v1677 = vmul.f32 %v1164, %v1665
          %v1678 = vmul.f32 %v1165, %v1666
          %v1679 = vadd.f32 %v1667, %v1668
          %v1680 = vsel %vm1191, %v1669, 0.0
          %v1681 = vadd.f32 %v1679, %v1680
          %v1682 = vadd.f32 %v1681, %v1670
          %v1683 = vadd.f32 %v1682, %v1671
          %v1684 = vsel %vm1191, %v1672, 0.0
          %v1685 = vadd.f32 %v1683, %v1684
          %v1686 = vadd.f32 %v1685, %v1673
          %v1687 = vadd.f32 %v1686, %v1674
          %v1688 = vsel %vm1191, %v1675, 0.0
          %v1689 = vadd.f32 %v1687, %v1688
          %v1690 = vsel %vm1202, %v1676, 0.0
          %v1691 = vadd.f32 %v1689, %v1690
          %v1692 = vsel %vm1202, %v1677, 0.0
          %v1693 = vadd.f32 %v1691, %v1692
          %v1694 = vsel %vm1207, %v1678, 0.0
          %v1695 = vadd.f32 %v1693, %v1694
          %1696 = vadd.xlane.f32.xlu0 %v1695
          %v1697 = vpop.xlane.xlu0 %1696
          %v1698 = vrot.slane %v1697, 4
          %v1699 = vadd.f32 %v1697, %v1698
          %v1700 = vrot.slane %v1699, 2
          %v1701 = vadd.f32 %v1699, %v1700
          %v1702 = vrot.slane %v1701, 1
          %v1703 = vadd.f32 %v1701, %v1702
          %s1704 = vtos %v1703
          %vm1705 = vcmp.eq.s32.totalorder %v299, 9
          %v1706 = vstv %s1704
          %v1707 = vsel %vm1705, %v1706, %v1653
          %v1708 = vadd.f32 %v1707, %v297
          %v1709 = vstv %s303
          %vm1710 = vcmp.eq.s32.totalorder %v301, %v1709
          %v1711 = vsel %vm1710, 1, 0
          %vm1712 = vcmp.eq.s32.totalorder %v1711, 1
          %v1713 = vperm.slane %v1708, 0
          %v1714 = vsel %vm1712, %v1713, %v308
        $region61: #{simple_cnn_forward.1} parent=39 // loop_footer
          %s307 = sadd.s32 1, %s303
        $region62: #{simple_cnn_forward.1} parent=39 // loop_footer_branch
          %302 = sbr.rel target = $region58
        $region63: #{simple_cnn_forward.1} parent=39 // loop_exit
          _
        %vm1715 = vcmask 80896
        %1716 = vst.msk [vmem:[%s293] sm:$0xff] %vm1715, %v308
        %s1717 = sand.u32 %s142, 1
        %s1718 = scalar_lea.sflag [#allocation4], %s1717
        %s1719 = sand.u32 %s142, 1
        %s1720 = smul.addr %s1719, 8
        %s1721 = scalar_lea.vmem [#allocation10], %s1720
        // Predicated region
        $region64: #{simple_cnn_forward.1} parent=39 // pred_check
          %p1722 = pneg %p152
        $region65: #{simple_cnn_forward.1} parent=39 // pred_check_branch
          %1724 = sbr.rel (%p1722) target = $region67
        $region66: #{simple_cnn_forward.1} parent=39 // pred_region
          %1726 = vsyncadd %s1718, 0
          %s1727 = smul.addr %s24, 8
          %s1728 = scalar_lea.hbm %s5, %s1727
          %s1730 = sshll.u32 %s1721, 4
          %s1731 = int_to_ptr.vmem [resolvable:$true] %s1730
          %s1732 = sshll.u32 %s1728, 4
          %s1733 = int_to_ptr.hbm [resolvable:$true] %s1732
          %1735 = dma.vmem_to_hbm [thread:$0]  %s1731, 128, %s1733, %s1718
        $region67: #{simple_cnn_forward.1} parent=39 // pred_fallthru
          _
      $region40: #{simple_cnn_forward.1} parent=5 // pred_fallthru
        _
      %p1736 = scmp.le.s32.totalorder 2, %s19
      // Predicated region
      $region68: #{simple_cnn_forward.1} parent=5 // pred_check
        %p1737 = pneg %p1736
      $region69: #{simple_cnn_forward.1} parent=5 // pred_check_branch
        %1739 = sbr.rel (%p1737) target = $region71
      $region70: #{simple_cnn_forward.1} parent=5 // pred_region
        %s1740 = ssub.s32 %s19, 2
        // Predicated region
        $region72: #{simple_cnn_forward.1} parent=70 // pred_check
          %p1741 = pneg %p158
        $region73: #{simple_cnn_forward.1} parent=70 // pred_check_branch
          %1743 = sbr.rel (%p1741) target = $region75
        $region74: #{simple_cnn_forward.1} parent=70 // pred_region
          %s1744 = sand.u32 %s143, 1
          %s1745 = scalar_lea.sflag [#allocation4], %s1744
          %s1746 = sand.u32 %s143, 1
          %s1747 = smul.addr %s1746, 8
          %s1748 = scalar_lea.vmem [#allocation10], %s1747
          %1750 = dma.done %s1745, 128
        $region75: #{simple_cnn_forward.1} parent=70 // pred_fallthru
          _
      $region71: #{simple_cnn_forward.1} parent=5 // pred_fallthru
        _
    $region6: #{simple_cnn_forward.1} parent=1 // loop_footer
      %s23 = sadd.s32 1, %s19
    $region7: #{simple_cnn_forward.1} parent=1 // loop_footer_branch
      %18 = sbr.rel target = $region3
    $region8: #{simple_cnn_forward.1} parent=1 // loop_exit
      _
    %1751 = vsyncpa [#allocation3], 1
    %s1752 = scalar_lea.sflag [#allocation3], 1
    %1753 = vsyncpa %s1752, 1
    %1754 = vsyncpa [#allocation6], 1
    %1755 = vsyncpa [#allocation9], 1
    %1756 = vsyncpa [#allocation4], 1
    %s1757 = scalar_lea.sflag [#allocation4], 1
    %1758 = vsyncpa %s1757, 1

</llo_original>
